<compile_context>
chip_gen: v5e
topology: v5e:2x2
jax: 0.10.0
libtpu: 0.0.40
codegen_flags: <defaults>
</compile_context>

<pallas_src>
from functools import partial

import jax
import jax.numpy as jnp
from jax.experimental import pallas as pl
from jax.experimental.pallas import tpu as pltpu


HIDDEN = 512   # Head's fixed hidden width (nn.Linear(in_f, 512))
OUT_F = 1      # FCN constructs Head(in_f, 1)
BN_EPS = 1e-5


# ---------------------------------------------------------------------------
# Kernels
# ---------------------------------------------------------------------------

def head_single_kernel(x_ref, w1_ref, b1_ref, w2_ref, o_ref):
    """Whole-K variant (kt == 1): no accumulator scratch, no reduction bookkeeping.

    x_ref  : (N, F_pad)      bf16 flattened features
    w1_ref : (F_pad, H/nh)   bf16 folded Linear1 weight (column half on v7x)
    b1_ref : (1, H/nh)       f32 folded Linear1 bias half
    w2_ref : (1, H/nh)       f32 folded Linear2 weight half as a lane-dense row
    o_ref  : (1, N, 128)     f32 per-core partial, broadcast across lanes
    """
    h = jnp.dot(x_ref[...], w1_ref[...], preferred_element_type=jnp.float32)
    y = jnp.maximum(h + b1_ref[...], 0.0)
    # Linear(512,1) as VPU multiply + lane reduction (no 1-wide MXU result).
    part = jnp.sum(y * w2_ref[...], axis=-1, keepdims=True)        # (N, 1)
    # Lane-dense write: full 128-lane vst instead of a masked 1-lane store.
    o_ref[...] = jnp.broadcast_to(part, (part.shape[0], 128))[None]


def head_tiled_kernel(x_ref, w1_ref, b1_ref, w2_ref, o_ref, acc_ref):
    """K-tiled variant: grid = (nh, kt); k is the 'arbitrary' reduction axis."""
    k = pl.program_id(1)

    @pl.when(k == 0)
    def _():
        acc_ref[...] = jnp.zeros_like(acc_ref)

    # Partial Linear(in_f, 512/nh) over this K tile (bf16 in, f32 MXU accum).
    acc_ref[...] += jnp.dot(x_ref[...], w1_ref[...],
                            preferred_element_type=jnp.float32)

    @pl.when(k == pl.num_programs(1) - 1)
    def _():
        y = jnp.maximum(acc_ref[...] + b1_ref[...], 0.0)           # bias + ReLU
        part = jnp.sum(y * w2_ref[...], axis=-1, keepdims=True)    # (N, 1)
        o_ref[...] = jnp.broadcast_to(part, (part.shape[0], 128))[None]


# ---------------------------------------------------------------------------
# Tiling / hardware config helpers (all static Python ints)
# ---------------------------------------------------------------------------

def _round_up(a, b):
    return ((a + b - 1) // b) * b


def _cdiv(a, b):
    return (a + b - 1) // b


def _hw_config():
    """Per-generation (max K tile, hidden split) — safe fallback on unknowns."""
    try:
        kind = jax.devices()[0].device_kind.lower()
    except Exception:  # pragma: no cover
        kind = ""
    if "v7" in kind:
        # Big tiles to amortise ~0.35us step overhead against ~3.2 TB/s HBM;
        # split HIDDEN across the two TensorCores.
        return 4096, 2
    if "v6" in kind:
        return 2048, 1
    # v5e (and anything unrecognised): 1 TC, ~820 GB/s — 1K tiles are enough.
    return 1024, 1


def choose_k_tiling(in_f, tk_max):
    """Pick (tk, f_pad): tk multiple of 128, tk <= ~tk_max, padding waste < tk."""
    f128 = _round_up(in_f, 128)
    kt = _cdiv(f128, tk_max)
    tk = _round_up(_cdiv(f128, kt), 128)
    return tk, tk * kt


# ---------------------------------------------------------------------------
# Forward
# ---------------------------------------------------------------------------

@partial(jax.jit, static_argnames=("tk", "nh"))
def fcn_forward(x_nchw, folded, *, tk, nh):
    """FCN.forward: base (identity) -> Head, fused into one Pallas kernel."""
    n = x_nchw.shape[0]
    x2d = jnp.reshape(x_nchw, (n, -1))          # nn.Flatten() on NCHW, row-major
    f = x2d.shape[1]

    w1 = folded["w1"]                            # (F_pad, 512) bf16, padded OFFLINE
    f_pad = w1.shape[0]
    assert f_pad % tk == 0 and f_pad >= f and HIDDEN % nh == 0

    # Pad/cast the activation only (zero-padded features contribute exactly 0).
    # TODO(synk): for large N*F, cast in-kernel or use allow_input_fusion so the
    # padded bf16 x is never materialised in HBM; negligible at N=2.
    x2d = jnp.pad(x2d.astype(jnp.bfloat16), ((0, 0), (0, f_pad - f)))

    kt = f_pad // tk
    hh = HIDDEN // nh
    grid = (nh, kt)                              # ("parallel", "arbitrary")

    cost = pl.CostEstimate(
        flops=2 * n * f_pad * HIDDEN + 3 * n * HIDDEN,
        transcendentals=0,
        bytes_accessed=(nh * n * f_pad * 2          # x (re-read per hidden half)
                        + f_pad * HIDDEN * 2        # w1 (dominant stream)
                        + 2 * HIDDEN * 4            # b1, w2_row
                        + nh * n * 128 * 4),        # partial outputs
    )

    if kt == 1:
        kernel = head_single_kernel
        scratch = []
    else:
        kernel = head_tiled_kernel
        scratch = [pltpu.VMEM((n, hh), jnp.float32)]

    # NOTE: w1 tile is (tk, hh) bf16 -> <= 2 MiB per buffer at the chosen tk for
    # every generation, so the default scoped VMEM limit is ample.
    # TODO(synk): sweep pipeline_mode=pl.Buffered(3) on x/w1 on v7x (keep only
    # if it measures >1 sigma better).
    partials = pl.pallas_call(
        kernel,
        out_shape=jax.ShapeDtypeStruct((nh, n, 128), jnp.float32),
        grid=grid,
        in_specs=[
            pl.BlockSpec((n, tk), lambda h, k: (0, k)),      # x K-tile
            pl.BlockSpec((tk, hh), lambda h, k: (k, h)),     # w1 K-tile, col half
            pl.BlockSpec((1, hh), lambda h, k: (0, h)),      # folded b1 half
            pl.BlockSpec((1, hh), lambda h, k: (0, h)),      # folded w2 row half
        ],
        out_specs=pl.BlockSpec((1, n, 128), lambda h, k: (h, 0, 0)),
        scratch_shapes=scratch,
        compiler_params=pltpu.CompilerParams(
            dimension_semantics=("parallel", "arbitrary")),
        cost_estimate=cost,
    )(x2d, w1, folded["b1"], folded["w2_row"])

    # Tiny epilogue: sum per-core hidden-half partials (lane 0 of each) and add
    # the folded b2 scalar (kept out of the kernel: no (1,1) VMEM block/DMA).
    return jnp.sum(partials[:, :, 0], axis=0)[:, None] + folded["b2"]


# ---------------------------------------------------------------------------
# Parameters (synthetic, matching Head(in_f, 1)) and offline folding
# ---------------------------------------------------------------------------

def init_params(key, in_f):
    """Deterministic synthetic parameters matching Head(in_f, 1) shapes."""
    k = jax.random.split(key, 8)

    # BatchNorm1d(in_f): gamma, beta, running_mean, running_var
    g1 = jax.random.normal(k[0], (in_f,), jnp.float32) * 0.1 + 1.0
    be1 = jax.random.normal(k[1], (in_f,), jnp.float32) * 0.1
    rm1 = jax.random.normal(k[2], (in_f,), jnp.float32) * 0.1
    rv1 = jnp.abs(jax.random.normal(k[3], (in_f,), jnp.float32) * 0.1) + 1.0

    # BatchNorm1d(512)
    g2 = jax.random.normal(k[4], (HIDDEN,), jnp.float32) * 0.1 + 1.0
    be2 = jax.random.normal(k[5], (HIDDEN,), jnp.float32) * 0.1
    rm2 = jnp.zeros((HIDDEN,), jnp.float32)
    rv2 = jnp.ones((HIDDEN,), jnp.float32)

    # Linear(in_f, 512): PyTorch weight is (512, in_f); store transposed.
    w1 = jax.random.normal(k[6], (in_f, HIDDEN), jnp.float32) / jnp.sqrt(in_f)
    b1 = jnp.zeros((HIDDEN,), jnp.float32)
    # Linear(512, 1)
    w2 = jax.random.normal(k[7], (HIDDEN, OUT_F), jnp.float32) / jnp.sqrt(HIDDEN)
    b2 = jnp.zeros((OUT_F,), jnp.float32)

    # Eval-mode BN as scale/shift:  y = x*scale + shift
    s1 = g1 / jnp.sqrt(rv1 + BN_EPS)
    t1 = be1 - rm1 * s1
    s2 = g2 / jnp.sqrt(rv2 + BN_EPS)
    t2 = be2 - rm2 * s2

    return {
        "bn1_scale": s1.reshape(1, in_f), "bn1_shift": t1.reshape(1, in_f),
        "w1_t": w1, "b1": b1.reshape(1, HIDDEN),
        "bn2_scale": s2.reshape(1, HIDDEN), "bn2_shift": t2.reshape(1, HIDDEN),
        "w2_t": w2, "b2": b2.reshape(1, OUT_F),
    }


def fold_params(params, f_pad):
    """Fold eval-mode BatchNorms into the Linear weights/biases (exact algebra)
    and pad/cast the big weight ONCE, offline (not inside the jitted forward)."""
    s1 = params["bn1_scale"][0]                               # (F,)
    t1 = params["bn1_shift"]                                  # (1, F)
    w1f = s1[:, None] * params["w1_t"]                        # (F, 512)
    b1f = params["b1"] + t1 @ params["w1_t"]                  # (1, 512)

    s2 = params["bn2_scale"][0]                               # (512,)
    t2 = params["bn2_shift"]                                  # (1, 512)
    w2f = s2[:, None] * params["w2_t"]                        # (512, 1)
    b2f = params["b2"] + t2 @ params["w2_t"]                  # (1, 1)

    in_f = w1f.shape[0]
    w1_padded = jnp.pad(w1f.astype(jnp.bfloat16),
                        ((0, f_pad - in_f), (0, 0)))          # (F_pad, 512) bf16

    return {
        "w1": w1_padded,
        "b1": b1f.astype(jnp.float32),
        "w2_row": w2f.reshape(1, HIDDEN).astype(jnp.float32),
        "b2": b2f.astype(jnp.float32),
    }


# ---------------------------------------------------------------------------
# References
# ---------------------------------------------------------------------------

def fcn_reference_f32(x_nchw, params):
    """Pure-JAX f32 reference with the original (unfolded) BN -> Linear order."""
    x = jnp.reshape(x_nchw, (x_nchw.shape[0], -1)).astype(jnp.float32)
    h = x * params["bn1_scale"] + params["bn1_shift"]
    y = jnp.maximum(h @ params["w1_t"] + params["b1"], 0.0)
    y = y * params["bn2_scale"] + params["bn2_shift"]
    return y @ params["w2_t"] + params["b2"]


def fcn_reference_bf16(x_nchw, folded):
    """Reference matching the kernel's bf16-weight / f32-accumulate math."""
    x = jnp.reshape(x_nchw, (x_nchw.shape[0], -1)).astype(jnp.bfloat16)
    w1 = folded["w1"][:x.shape[1]]                       # padded rows are zero
    h = jnp.dot(x, w1, preferred_element_type=jnp.float32)
    y = jnp.maximum(h + folded["b1"], 0.0)
    return jnp.sum(y * folded["w2_row"], axis=-1, keepdims=True) + folded["b2"]


if __name__ == "__main__":
    key = jax.random.PRNGKey(0)
    kx, kp = jax.random.split(key)

    # NCHW input: batch=2, channels=4, spatial=16x16  -> in_f = 4*16*16 = 1024
    x = jax.random.normal(kx, (2, 4, 16, 16), jnp.float32)
    in_f = 4 * 16 * 16
    params = init_params(kp, in_f)

    tk_max, nh = _hw_config()
    tk, f_pad = choose_k_tiling(in_f, tk_max)
    folded = fold_params(params, f_pad)          # pad + bf16-cast w1 ONCE

    out = jax.block_until_ready(fcn_forward(x, folded, tk=tk, nh=nh))
    assert out.shape == (2, OUT_F), out.shape

    # Tight check: reference using the same bf16-weight / f32-accumulate math.
    ref_q = fcn_reference_bf16(x, folded)
    assert jnp.allclose(out, ref_q, atol=2e-3, rtol=2e-3), (out, ref_q)

    # Loose check: original f32 BN -> Linear semantics; remaining difference is
    # bf16 quantization of x / w1 (intentional, per perf review).
    ref = fcn_reference_f32(x, params)
    assert jnp.allclose(out, ref, atol=5e-2, rtol=5e-2), (out, ref)

    print("KERNEL_OK")
</pallas_src>

<mosaic_0001>
module attributes {stable_mosaic.version = 11 : i64} {
  func.func @head_single_kernel(%arg0: i32, %arg1: i32, %arg2: memref<2x1024xbf16, #tpu.memory_space<vmem>>, %arg3: memref<1024x512xbf16, #tpu.memory_space<vmem>>, %arg4: memref<1x512xf32, #tpu.memory_space<vmem>>, %arg5: memref<1x512xf32, #tpu.memory_space<vmem>>, %arg6: memref<1x2x128xf32, #tpu.memory_space<vmem>>) attributes {dimension_semantics = [#tpu.dimension_semantics<parallel>, #tpu.dimension_semantics<arbitrary>], iteration_bounds = array<i64: 1, 1>, scalar_prefetch = 0 : i64, scratch_operands = 0 : i64, tpu.core_type = #tpu.core_type<tc>, window_params = [{transform_indices = @transform_0, window_bounds = array<i64: 2, 1024>}, {transform_indices = @transform_1, window_bounds = array<i64: 1024, 512>}, {transform_indices = @transform_2, window_bounds = array<i64: 1, 512>}, {transform_indices = @transform_3, window_bounds = array<i64: 1, 512>}, {transform_indices = @transform_4, window_bounds = array<i64: 1, 2, 128>}]} {
    %c0 = arith.constant 0 : index
    %c0_0 = arith.constant 0 : index
    %0 = vector.load %arg2[%c0, %c0_0] : memref<2x1024xbf16, #tpu.memory_space<vmem>>, vector<2x1024xbf16>
    %c0_1 = arith.constant 0 : index
    %c0_2 = arith.constant 0 : index
    %1 = vector.load %arg3[%c0_1, %c0_2] : memref<1024x512xbf16, #tpu.memory_space<vmem>>, vector<1024x512xbf16>
    %cst = arith.constant dense<0.000000e+00> : vector<2x512xf32>
    %2 = tpu.matmul %0, %1, %cst {dimension_numbers = #tpu.dot_dimension_numbers<[1], [0], [0], [1], [0, 0, 1, 1], [], []>} : vector<2x1024xbf16>, vector<1024x512xbf16>, vector<2x512xf32> -> vector<2x512xf32>
    %c0_3 = arith.constant 0 : index
    %c0_4 = arith.constant 0 : index
    %3 = vector.load %arg4[%c0_3, %c0_4] : memref<1x512xf32, #tpu.memory_space<vmem>>, vector<1x512xf32>
    %4 = vector.broadcast %3 : vector<1x512xf32> to vector<2x512xf32>
    %5 = arith.addf %2, %4 : vector<2x512xf32>
    %cst_5 = arith.constant 0.000000e+00 : f32
    %6 = vector.broadcast %cst_5 : f32 to vector<2x512xf32>
    %7 = arith.maximumf %5, %6 : vector<2x512xf32>
    %c0_6 = arith.constant 0 : index
    %c0_7 = arith.constant 0 : index
    %8 = vector.load %arg5[%c0_6, %c0_7] : memref<1x512xf32, #tpu.memory_space<vmem>>, vector<1x512xf32>
    %9 = vector.broadcast %8 : vector<1x512xf32> to vector<2x512xf32>
    %10 = arith.mulf %7, %9 : vector<2x512xf32>
    %cst_8 = arith.constant dense<0.000000e+00> : vector<2xf32>
    %11 = vector.multi_reduction <add>, %10, %cst_8 [1] : vector<2x512xf32> to vector<2xf32>
    %12 = vector.shape_cast %11 : vector<2xf32> to vector<2x1xf32>
    %13 = vector.shape_cast %12 : vector<2x1xf32> to vector<2x1xf32>
    %14 = vector.broadcast %13 : vector<2x1xf32> to vector<2x128xf32>
    %15 = vector.shape_cast %14 : vector<2x128xf32> to vector<1x2x128xf32>
    %c0_9 = arith.constant 0 : index
    %c0_10 = arith.constant 0 : index
    %c0_11 = arith.constant 0 : index
    %16 = vector.load %arg6[%c0_9, %c0_10, %c0_11] : memref<1x2x128xf32, #tpu.memory_space<vmem>>, vector<1x2x128xf32>
    tpu.vector_store %arg6[%c0_9, %c0_10, %c0_11], %15 {strides = array<i32>} : memref<1x2x128xf32, #tpu.memory_space<vmem>>, vector<1x2x128xf32>,
    return
  }
  func.func @transform_0(%arg0: i32, %arg1: i32) -> (i32, i32) {
    %c0_i32 = arith.constant 0 : i32
    %c0_i32_0 = arith.constant 0 : i32
    return %c0_i32, %arg1 : i32, i32
  }
  func.func @transform_1(%arg0: i32, %arg1: i32) -> (i32, i32) {
    %c0_i32 = arith.constant 0 : i32
    return %arg1, %arg0 : i32, i32
  }
  func.func @transform_2(%arg0: i32, %arg1: i32) -> (i32, i32) {
    %c0_i32 = arith.constant 0 : i32
    %c0_i32_0 = arith.constant 0 : i32
    return %c0_i32, %arg0 : i32, i32
  }
  func.func @transform_3(%arg0: i32, %arg1: i32) -> (i32, i32) {
    %c0_i32 = arith.constant 0 : i32
    %c0_i32_0 = arith.constant 0 : i32
    return %c0_i32, %arg0 : i32, i32
  }
  func.func @transform_4(%arg0: i32, %arg1: i32) -> (i32, i32, i32) {
    %c0_i32 = arith.constant 0 : i32
    %c0_i32_0 = arith.constant 0 : i32
    %c0_i32_1 = arith.constant 0 : i32
    return %arg0, %c0_i32, %c0_i32_0 : i32, i32, i32
  }
}

</mosaic_0001>

<llo_original>
// kernel: fcn_forward.1
$region0: #{fcn_forward.1}
  #allocation0 [shape = 'u32[]', space=smem, size = 0x4, offset = 0x4, fixed_abs, tag = 'smem constant byte address 0x4 - core index']
  #allocation1 [shape = 'u32[72,128]{1,0:T(1,128)}', space=vmem, size = 0x9000, scoped, tag = 'internal scratch']
  %s0 = inlined_call_operand.vmem [shape: bf16[2,1024], index: 0, kind: input, shape index: {}]
  %s1 = inlined_call_operand.hbm [shape: bf16[1024,512], index: 1, kind: input, shape index: {}]
  %s2 = inlined_call_operand.vmem [shape: f32[1,512], index: 2, kind: input, shape index: {}]
  %s3 = inlined_call_operand.vmem [shape: f32[1,512], index: 3, kind: input, shape index: {}]
  %s4 = inlined_call_operand.vmem [shape: f32[1,2,128], index: 4, kind: output, shape index: {}]
  %s5 = sld [smem:[#allocation0]]
  $region30: #{fcn_forward.1} parent=0
    _
  %s7 = ssub.s32 1, %s5
  %s8 = scalar_select 0, %s7, %s5
  $region1: #{fcn_forward.1} parent=0
    #allocation2 [shape = 'u8[1048576]{0}', space=vmem, size = 0x100000, scoped, tag = 'input window, operand 1, single buffered']
    #allocation3 [shape = 's32[1]{0}', space=sflag, size = 0x4, scoped, tag = 'scoped memory for fcn_forward.1']
    %9 = vsyncpa [#allocation3], 0
    // Predicated region
    $region2: #{fcn_forward.1} parent=1 // pred_check
      _
    $region3: #{fcn_forward.1} parent=1 // pred_check_branch
      %11 = sbr.rel (0) target = $region5
    $region4: #{fcn_forward.1} parent=1 // pred_region
      _
    $region5: #{fcn_forward.1} parent=1 // pred_fallthru
      _
    // Predicated region
    $region6: #{fcn_forward.1} parent=1 // pred_check
      _
    $region7: #{fcn_forward.1} parent=1 // pred_check_branch
      %13 = sbr.rel (0) target = $region9
    $region8: #{fcn_forward.1} parent=1 // pred_region
      %15 = vsyncadd [#allocation3], 0
      %s16 = sshll.u32 %s1, 4
      %s17 = int_to_ptr.hbm [resolvable:$true] %s16
      %s18 = sshll.u32 [#allocation2], 4
      %s19 = int_to_ptr.vmem [resolvable:$true] %s18
      %24 = dma.hbm_to_vmem [thread:$0]  %s17, 32768, %s19, [#allocation3], 256, 256, 16
    $region9: #{fcn_forward.1} parent=1 // pred_fallthru
      _
    // Predicated region
    $region10: #{fcn_forward.1} parent=1 // pred_check
      _
    $region11: #{fcn_forward.1} parent=1 // pred_check_branch
      %26 = sbr.rel (0) target = $region13
    $region12: #{fcn_forward.1} parent=1 // pred_region
      _
    $region13: #{fcn_forward.1} parent=1 // pred_fallthru
      _
    // Predicated region
    $region14: #{fcn_forward.1} parent=1 // pred_check
      _
    $region15: #{fcn_forward.1} parent=1 // pred_check_branch
      %28 = sbr.rel (0) target = $region17
    $region16: #{fcn_forward.1} parent=1 // pred_region
      _
    $region17: #{fcn_forward.1} parent=1 // pred_fallthru
      _
    // Predicated region
    $region18: #{fcn_forward.1} parent=1 // pred_check
      _
    $region19: #{fcn_forward.1} parent=1 // pred_check_branch
      %30 = sbr.rel (0) target = $region21
    $region20: #{fcn_forward.1} parent=1 // pred_region
      %32 = dma.done [#allocation3], 32768
    $region21: #{fcn_forward.1} parent=1 // pred_fallthru
      _
    %v33 = vld [vmem:[%s0] sm:$0xff]
    %v34 = vld [vmem:[#allocation2] sm:$0xff]
    %v35 = vld [vmem:[#allocation2 + $0x8] sm:$0xff]
    %v36 = vld [vmem:[#allocation2 + $0x10] sm:$0xff]
    %v37 = vld [vmem:[#allocation2 + $0x18] sm:$0xff]
    %v38 = vld [vmem:[#allocation2 + $0x20] sm:$0xff]
    %v39 = vld [vmem:[#allocation2 + $0x28] sm:$0xff]
    %v40 = vld [vmem:[#allocation2 + $0x30] sm:$0xff]
    %v41 = vld [vmem:[#allocation2 + $0x38] sm:$0xff]
    %v42 = vld [vmem:[#allocation2 + $0x40] sm:$0xff]
    %v43 = vld [vmem:[#allocation2 + $0x48] sm:$0xff]
    %v44 = vld [vmem:[#allocation2 + $0x50] sm:$0xff]
    %v45 = vld [vmem:[#allocation2 + $0x58] sm:$0xff]
    %v46 = vld [vmem:[#allocation2 + $0x60] sm:$0xff]
    %v47 = vld [vmem:[#allocation2 + $0x68] sm:$0xff]
    %v48 = vld [vmem:[#allocation2 + $0x70] sm:$0xff]
    %v49 = vld [vmem:[#allocation2 + $0x78] sm:$0xff]
    %v50 = vld [vmem:[#allocation2 + $0x80] sm:$0xff]
    %v51 = vld [vmem:[#allocation2 + $0x88] sm:$0xff]
    %v52 = vld [vmem:[#allocation2 + $0x90] sm:$0xff]
    %v53 = vld [vmem:[#allocation2 + $0x98] sm:$0xff]
    %v54 = vld [vmem:[#allocation2 + $0xa0] sm:$0xff]
    %v55 = vld [vmem:[#allocation2 + $0xa8] sm:$0xff]
    %v56 = vld [vmem:[#allocation2 + $0xb0] sm:$0xff]
    %v57 = vld [vmem:[#allocation2 + $0xb8] sm:$0xff]
    %v58 = vld [vmem:[#allocation2 + $0xc0] sm:$0xff]
    %v59 = vld [vmem:[#allocation2 + $0xc8] sm:$0xff]
    %v60 = vld [vmem:[#allocation2 + $0xd0] sm:$0xff]
    %v61 = vld [vmem:[#allocation2 + $0xd8] sm:$0xff]
    %v62 = vld [vmem:[#allocation2 + $0xe0] sm:$0xff]
    %v63 = vld [vmem:[#allocation2 + $0xe8] sm:$0xff]
    %v64 = vld [vmem:[#allocation2 + $0xf0] sm:$0xff]
    %v65 = vld [vmem:[#allocation2 + $0xf8] sm:$0xff]
    %v66 = vld [vmem:[#allocation2 + $0x100] sm:$0xff]
    %v67 = vld [vmem:[#allocation2 + $0x108] sm:$0xff]
    %v68 = vld [vmem:[#allocation2 + $0x110] sm:$0xff]
    %v69 = vld [vmem:[#allocation2 + $0x118] sm:$0xff]
    %v70 = vld [vmem:[#allocation2 + $0x120] sm:$0xff]
    %v71 = vld [vmem:[#allocation2 + $0x128] sm:$0xff]
    %v72 = vld [vmem:[#allocation2 + $0x130] sm:$0xff]
    %v73 = vld [vmem:[#allocation2 + $0x138] sm:$0xff]
    %v74 = vld [vmem:[#allocation2 + $0x140] sm:$0xff]
    %v75 = vld [vmem:[#allocation2 + $0x148] sm:$0xff]
    %v76 = vld [vmem:[#allocation2 + $0x150] sm:$0xff]
    %v77 = vld [vmem:[#allocation2 + $0x158] sm:$0xff]
    %v78 = vld [vmem:[#allocation2 + $0x160] sm:$0xff]
    %v79 = vld [vmem:[#allocation2 + $0x168] sm:$0xff]
    %v80 = vld [vmem:[#allocation2 + $0x170] sm:$0xff]
    %v81 = vld [vmem:[#allocation2 + $0x178] sm:$0xff]
    %v82 = vld [vmem:[#allocation2 + $0x180] sm:$0xff]
    %v83 = vld [vmem:[#allocation2 + $0x188] sm:$0xff]
    %v84 = vld [vmem:[#allocation2 + $0x190] sm:$0xff]
    %v85 = vld [vmem:[#allocation2 + $0x198] sm:$0xff]
    %v86 = vld [vmem:[#allocation2 + $0x1a0] sm:$0xff]
    %v87 = vld [vmem:[#allocation2 + $0x1a8] sm:$0xff]
    %v88 = vld [vmem:[#allocation2 + $0x1b0] sm:$0xff]
    %v89 = vld [vmem:[#allocation2 + $0x1b8] sm:$0xff]
    %v90 = vld [vmem:[#allocation2 + $0x1c0] sm:$0xff]
    %v91 = vld [vmem:[#allocation2 + $0x1c8] sm:$0xff]
    %v92 = vld [vmem:[#allocation2 + $0x1d0] sm:$0xff]
    %v93 = vld [vmem:[#allocation2 + $0x1d8] sm:$0xff]
    %v94 = vld [vmem:[#allocation2 + $0x1e0] sm:$0xff]
    %v95 = vld [vmem:[#allocation2 + $0x1e8] sm:$0xff]
    %v96 = vld [vmem:[#allocation2 + $0x1f0] sm:$0xff]
    %v97 = vld [vmem:[#allocation2 + $0x1f8] sm:$0xff]
    %v98 = vld [vmem:[#allocation2 + $0x200] sm:$0xff]
    %v99 = vld [vmem:[#allocation2 + $0x208] sm:$0xff]
    %v100 = vld [vmem:[#allocation2 + $0x210] sm:$0xff]
    %v101 = vld [vmem:[#allocation2 + $0x218] sm:$0xff]
    %v102 = vld [vmem:[#allocation2 + $0x220] sm:$0xff]
    %v103 = vld [vmem:[#allocation2 + $0x228] sm:$0xff]
    %v104 = vld [vmem:[#allocation2 + $0x230] sm:$0xff]
    %v105 = vld [vmem:[#allocation2 + $0x238] sm:$0xff]
    %v106 = vld [vmem:[#allocation2 + $0x240] sm:$0xff]
    %v107 = vld [vmem:[#allocation2 + $0x248] sm:$0xff]
    %v108 = vld [vmem:[#allocation2 + $0x250] sm:$0xff]
    %v109 = vld [vmem:[#allocation2 + $0x258] sm:$0xff]
    %v110 = vld [vmem:[#allocation2 + $0x260] sm:$0xff]
    %v111 = vld [vmem:[#allocation2 + $0x268] sm:$0xff]
    %v112 = vld [vmem:[#allocation2 + $0x270] sm:$0xff]
    %v113 = vld [vmem:[#allocation2 + $0x278] sm:$0xff]
    %v114 = vld [vmem:[#allocation2 + $0x280] sm:$0xff]
    %v115 = vld [vmem:[#allocation2 + $0x288] sm:$0xff]
    %v116 = vld [vmem:[#allocation2 + $0x290] sm:$0xff]
    %v117 = vld [vmem:[#allocation2 + $0x298] sm:$0xff]
    %v118 = vld [vmem:[#allocation2 + $0x2a0] sm:$0xff]
    %v119 = vld [vmem:[#allocation2 + $0x2a8] sm:$0xff]
    %v120 = vld [vmem:[#allocation2 + $0x2b0] sm:$0xff]
    %v121 = vld [vmem:[#allocation2 + $0x2b8] sm:$0xff]
    %v122 = vld [vmem:[#allocation2 + $0x2c0] sm:$0xff]
    %v123 = vld [vmem:[#allocation2 + $0x2c8] sm:$0xff]
    %v124 = vld [vmem:[#allocation2 + $0x2d0] sm:$0xff]
    %v125 = vld [vmem:[#allocation2 + $0x2d8] sm:$0xff]
    %v126 = vld [vmem:[#allocation2 + $0x2e0] sm:$0xff]
    %v127 = vld [vmem:[#allocation2 + $0x2e8] sm:$0xff]
    %v128 = vld [vmem:[#allocation2 + $0x2f0] sm:$0xff]
    %v129 = vld [vmem:[#allocation2 + $0x2f8] sm:$0xff]
    %v130 = vld [vmem:[#allocation2 + $0x300] sm:$0xff]
    %v131 = vld [vmem:[#allocation2 + $0x308] sm:$0xff]
    %v132 = vld [vmem:[#allocation2 + $0x310] sm:$0xff]
    %v133 = vld [vmem:[#allocation2 + $0x318] sm:$0xff]
    %v134 = vld [vmem:[#allocation2 + $0x320] sm:$0xff]
    %v135 = vld [vmem:[#allocation2 + $0x328] sm:$0xff]
    %v136 = vld [vmem:[#allocation2 + $0x330] sm:$0xff]
    %v137 = vld [vmem:[#allocation2 + $0x338] sm:$0xff]
    %v138 = vld [vmem:[#allocation2 + $0x340] sm:$0xff]
    %v139 = vld [vmem:[#allocation2 + $0x348] sm:$0xff]
    %v140 = vld [vmem:[#allocation2 + $0x350] sm:$0xff]
    %v141 = vld [vmem:[#allocation2 + $0x358] sm:$0xff]
    %v142 = vld [vmem:[#allocation2 + $0x360] sm:$0xff]
    %v143 = vld [vmem:[#allocation2 + $0x368] sm:$0xff]
    %v144 = vld [vmem:[#allocation2 + $0x370] sm:$0xff]
    %v145 = vld [vmem:[#allocation2 + $0x378] sm:$0xff]
    %v146 = vld [vmem:[#allocation2 + $0x380] sm:$0xff]
    %v147 = vld [vmem:[#allocation2 + $0x388] sm:$0xff]
    %v148 = vld [vmem:[#allocation2 + $0x390] sm:$0xff]
    %v149 = vld [vmem:[#allocation2 + $0x398] sm:$0xff]
    %v150 = vld [vmem:[#allocation2 + $0x3a0] sm:$0xff]
    %v151 = vld [vmem:[#allocation2 + $0x3a8] sm:$0xff]
    %v152 = vld [vmem:[#allocation2 + $0x3b0] sm:$0xff]
    %v153 = vld [vmem:[#allocation2 + $0x3b8] sm:$0xff]
    %v154 = vld [vmem:[#allocation2 + $0x3c0] sm:$0xff]
    %v155 = vld [vmem:[#allocation2 + $0x3c8] sm:$0xff]
    %v156 = vld [vmem:[#allocation2 + $0x3d0] sm:$0xff]
    %v157 = vld [vmem:[#allocation2 + $0x3d8] sm:$0xff]
    %v158 = vld [vmem:[#allocation2 + $0x3e0] sm:$0xff]
    %v159 = vld [vmem:[#allocation2 + $0x3e8] sm:$0xff]
    %v160 = vld [vmem:[#allocation2 + $0x3f0] sm:$0xff]
    %v161 = vld [vmem:[#allocation2 + $0x3f8] sm:$0xff]
    %v162 = vld [vmem:[#allocation2 + $0x400] sm:$0xff]
    %v163 = vld [vmem:[#allocation2 + $0x408] sm:$0xff]
    %v164 = vld [vmem:[#allocation2 + $0x410] sm:$0xff]
    %v165 = vld [vmem:[#allocation2 + $0x418] sm:$0xff]
    %v166 = vld [vmem:[#allocation2 + $0x420] sm:$0xff]
    %v167 = vld [vmem:[#allocation2 + $0x428] sm:$0xff]
    %v168 = vld [vmem:[#allocation2 + $0x430] sm:$0xff]
    %v169 = vld [vmem:[#allocation2 + $0x438] sm:$0xff]
    %v170 = vld [vmem:[#allocation2 + $0x440] sm:$0xff]
    %v171 = vld [vmem:[#allocation2 + $0x448] sm:$0xff]
    %v172 = vld [vmem:[#allocation2 + $0x450] sm:$0xff]
    %v173 = vld [vmem:[#allocation2 + $0x458] sm:$0xff]
    %v174 = vld [vmem:[#allocation2 + $0x460] sm:$0xff]
    %v175 = vld [vmem:[#allocation2 + $0x468] sm:$0xff]
    %v176 = vld [vmem:[#allocation2 + $0x470] sm:$0xff]
    %v177 = vld [vmem:[#allocation2 + $0x478] sm:$0xff]
    %v178 = vld [vmem:[#allocation2 + $0x480] sm:$0xff]
    %v179 = vld [vmem:[#allocation2 + $0x488] sm:$0xff]
    %v180 = vld [vmem:[#allocation2 + $0x490] sm:$0xff]
    %v181 = vld [vmem:[#allocation2 + $0x498] sm:$0xff]
    %v182 = vld [vmem:[#allocation2 + $0x4a0] sm:$0xff]
    %v183 = vld [vmem:[#allocation2 + $0x4a8] sm:$0xff]
    %v184 = vld [vmem:[#allocation2 + $0x4b0] sm:$0xff]
    %v185 = vld [vmem:[#allocation2 + $0x4b8] sm:$0xff]
    %v186 = vld [vmem:[#allocation2 + $0x4c0] sm:$0xff]
    %v187 = vld [vmem:[#allocation2 + $0x4c8] sm:$0xff]
    %v188 = vld [vmem:[#allocation2 + $0x4d0] sm:$0xff]
    %v189 = vld [vmem:[#allocation2 + $0x4d8] sm:$0xff]
    %v190 = vld [vmem:[#allocation2 + $0x4e0] sm:$0xff]
    %v191 = vld [vmem:[#allocation2 + $0x4e8] sm:$0xff]
    %v192 = vld [vmem:[#allocation2 + $0x4f0] sm:$0xff]
    %v193 = vld [vmem:[#allocation2 + $0x4f8] sm:$0xff]
    %v194 = vld [vmem:[#allocation2 + $0x500] sm:$0xff]
    %v195 = vld [vmem:[#allocation2 + $0x508] sm:$0xff]
    %v196 = vld [vmem:[#allocation2 + $0x510] sm:$0xff]
    %v197 = vld [vmem:[#allocation2 + $0x518] sm:$0xff]
    %v198 = vld [vmem:[#allocation2 + $0x520] sm:$0xff]
    %v199 = vld [vmem:[#allocation2 + $0x528] sm:$0xff]
    %v200 = vld [vmem:[#allocation2 + $0x530] sm:$0xff]
    %v201 = vld [vmem:[#allocation2 + $0x538] sm:$0xff]
    %v202 = vld [vmem:[#allocation2 + $0x540] sm:$0xff]
    %v203 = vld [vmem:[#allocation2 + $0x548] sm:$0xff]
    %v204 = vld [vmem:[#allocation2 + $0x550] sm:$0xff]
    %v205 = vld [vmem:[#allocation2 + $0x558] sm:$0xff]
    %v206 = vld [vmem:[#allocation2 + $0x560] sm:$0xff]
    %v207 = vld [vmem:[#allocation2 + $0x568] sm:$0xff]
    %v208 = vld [vmem:[#allocation2 + $0x570] sm:$0xff]
    %v209 = vld [vmem:[#allocation2 + $0x578] sm:$0xff]
    %v210 = vld [vmem:[#allocation2 + $0x580] sm:$0xff]
    %v211 = vld [vmem:[#allocation2 + $0x588] sm:$0xff]
    %v212 = vld [vmem:[#allocation2 + $0x590] sm:$0xff]
    %v213 = vld [vmem:[#allocation2 + $0x598] sm:$0xff]
    %v214 = vld [vmem:[#allocation2 + $0x5a0] sm:$0xff]
    %v215 = vld [vmem:[#allocation2 + $0x5a8] sm:$0xff]
    %v216 = vld [vmem:[#allocation2 + $0x5b0] sm:$0xff]
    %v217 = vld [vmem:[#allocation2 + $0x5b8] sm:$0xff]
    %v218 = vld [vmem:[#allocation2 + $0x5c0] sm:$0xff]
    %v219 = vld [vmem:[#allocation2 + $0x5c8] sm:$0xff]
    %v220 = vld [vmem:[#allocation2 + $0x5d0] sm:$0xff]
    %v221 = vld [vmem:[#allocation2 + $0x5d8] sm:$0xff]
    %v222 = vld [vmem:[#allocation2 + $0x5e0] sm:$0xff]
    %v223 = vld [vmem:[#allocation2 + $0x5e8] sm:$0xff]
    %v224 = vld [vmem:[#allocation2 + $0x5f0] sm:$0xff]
    %v225 = vld [vmem:[#allocation2 + $0x5f8] sm:$0xff]
    %v226 = vld [vmem:[#allocation2 + $0x600] sm:$0xff]
    %v227 = vld [vmem:[#allocation2 + $0x608] sm:$0xff]
    %v228 = vld [vmem:[#allocation2 + $0x610] sm:$0xff]
    %v229 = vld [vmem:[#allocation2 + $0x618] sm:$0xff]
    %v230 = vld [vmem:[#allocation2 + $0x620] sm:$0xff]
    %v231 = vld [vmem:[#allocation2 + $0x628] sm:$0xff]
    %v232 = vld [vmem:[#allocation2 + $0x630] sm:$0xff]
    %v233 = vld [vmem:[#allocation2 + $0x638] sm:$0xff]
    %v234 = vld [vmem:[#allocation2 + $0x640] sm:$0xff]
    %v235 = vld [vmem:[#allocation2 + $0x648] sm:$0xff]
    %v236 = vld [vmem:[#allocation2 + $0x650] sm:$0xff]
    %v237 = vld [vmem:[#allocation2 + $0x658] sm:$0xff]
    %v238 = vld [vmem:[#allocation2 + $0x660] sm:$0xff]
    %v239 = vld [vmem:[#allocation2 + $0x668] sm:$0xff]
    %v240 = vld [vmem:[#allocation2 + $0x670] sm:$0xff]
    %v241 = vld [vmem:[#allocation2 + $0x678] sm:$0xff]
    %v242 = vld [vmem:[#allocation2 + $0x680] sm:$0xff]
    %v243 = vld [vmem:[#allocation2 + $0x688] sm:$0xff]
    %v244 = vld [vmem:[#allocation2 + $0x690] sm:$0xff]
    %v245 = vld [vmem:[#allocation2 + $0x698] sm:$0xff]
    %v246 = vld [vmem:[#allocation2 + $0x6a0] sm:$0xff]
    %v247 = vld [vmem:[#allocation2 + $0x6a8] sm:$0xff]
    %v248 = vld [vmem:[#allocation2 + $0x6b0] sm:$0xff]
    %v249 = vld [vmem:[#allocation2 + $0x6b8] sm:$0xff]
    %v250 = vld [vmem:[#allocation2 + $0x6c0] sm:$0xff]
    %v251 = vld [vmem:[#allocation2 + $0x6c8] sm:$0xff]
    %v252 = vld [vmem:[#allocation2 + $0x6d0] sm:$0xff]
    %v253 = vld [vmem:[#allocation2 + $0x6d8] sm:$0xff]
    %v254 = vld [vmem:[#allocation2 + $0x6e0] sm:$0xff]
    %v255 = vld [vmem:[#allocation2 + $0x6e8] sm:$0xff]
    %v256 = vld [vmem:[#allocation2 + $0x6f0] sm:$0xff]
    %v257 = vld [vmem:[#allocation2 + $0x6f8] sm:$0xff]
    %v258 = vld [vmem:[#allocation2 + $0x700] sm:$0xff]
    %v259 = vld [vmem:[#allocation2 + $0x708] sm:$0xff]
    %v260 = vld [vmem:[#allocation2 + $0x710] sm:$0xff]
    %v261 = vld [vmem:[#allocation2 + $0x718] sm:$0xff]
    %v262 = vld [vmem:[#allocation2 + $0x720] sm:$0xff]
    %v263 = vld [vmem:[#allocation2 + $0x728] sm:$0xff]
    %v264 = vld [vmem:[#allocation2 + $0x730] sm:$0xff]
    %v265 = vld [vmem:[#allocation2 + $0x738] sm:$0xff]
    %v266 = vld [vmem:[#allocation2 + $0x740] sm:$0xff]
    %v267 = vld [vmem:[#allocation2 + $0x748] sm:$0xff]
    %v268 = vld [vmem:[#allocation2 + $0x750] sm:$0xff]
    %v269 = vld [vmem:[#allocation2 + $0x758] sm:$0xff]
    %v270 = vld [vmem:[#allocation2 + $0x760] sm:$0xff]
    %v271 = vld [vmem:[#allocation2 + $0x768] sm:$0xff]
    %v272 = vld [vmem:[#allocation2 + $0x770] sm:$0xff]
    %v273 = vld [vmem:[#allocation2 + $0x778] sm:$0xff]
    %v274 = vld [vmem:[#allocation2 + $0x780] sm:$0xff]
    %v275 = vld [vmem:[#allocation2 + $0x788] sm:$0xff]
    %v276 = vld [vmem:[#allocation2 + $0x790] sm:$0xff]
    %v277 = vld [vmem:[#allocation2 + $0x798] sm:$0xff]
    %v278 = vld [vmem:[#allocation2 + $0x7a0] sm:$0xff]
    %v279 = vld [vmem:[#allocation2 + $0x7a8] sm:$0xff]
    %v280 = vld [vmem:[#allocation2 + $0x7b0] sm:$0xff]
    %v281 = vld [vmem:[#allocation2 + $0x7b8] sm:$0xff]
    %v282 = vld [vmem:[#allocation2 + $0x7c0] sm:$0xff]
    %v283 = vld [vmem:[#allocation2 + $0x7c8] sm:$0xff]
    %v284 = vld [vmem:[#allocation2 + $0x7d0] sm:$0xff]
    %v285 = vld [vmem:[#allocation2 + $0x7d8] sm:$0xff]
    %v286 = vld [vmem:[#allocation2 + $0x7e0] sm:$0xff]
    %v287 = vld [vmem:[#allocation2 + $0x7e8] sm:$0xff]
    %v288 = vld [vmem:[#allocation2 + $0x7f0] sm:$0xff]
    %v289 = vld [vmem:[#allocation2 + $0x7f8] sm:$0xff]
    %v290 = vld [vmem:[%s2] sm:$0xf]
    %v292 = vperm.slane %v290, 0
    %v293 = vperm.slane %v290, 1
    %v294 = vperm.slane %v290, 2
    %v295 = vperm.slane %v290, 3
    %301 = vst [vmem:[#allocation1] ss:$9 sm:$0xff] %v33
    %v302 = vld [vmem:[#allocation1] sm:$0xff]
    %v303 = vld [vmem:[#allocation1 + $0x9] sm:$0xff]
    %v304 = vld [vmem:[#allocation1 + $0x12] sm:$0xff]
    %v305 = vld [vmem:[#allocation1 + $0x1b] sm:$0xff]
    %v306 = vld [vmem:[#allocation1 + $0x24] sm:$0xff]
    %v307 = vld [vmem:[#allocation1 + $0x2d] sm:$0xff]
    %v308 = vld [vmem:[#allocation1 + $0x36] sm:$0xff]
    %v309 = vld [vmem:[#allocation1 + $0x3f] sm:$0xff]
    %v574 = vunpack.c.l.b16 %v34
    %v575 = vunpack.c.h.b16 %v34
    %v576 = vunpack.c.l.b16 %v35
    %v577 = vunpack.c.h.b16 %v35
    %v578 = vunpack.c.l.b16 %v36
    %v579 = vunpack.c.h.b16 %v36
    %v580 = vunpack.c.l.b16 %v37
    %v581 = vunpack.c.h.b16 %v37
    %v582 = vunpack.c.l.b16 %v38
    %v583 = vunpack.c.h.b16 %v38
    %v584 = vunpack.c.l.b16 %v39
    %v585 = vunpack.c.h.b16 %v39
    %v586 = vunpack.c.l.b16 %v40
    %v587 = vunpack.c.h.b16 %v40
    %v588 = vunpack.c.l.b16 %v41
    %v589 = vunpack.c.h.b16 %v41
    %v590 = vunpack.c.l.b16 %v42
    %v591 = vunpack.c.h.b16 %v42
    %v592 = vunpack.c.l.b16 %v43
    %v593 = vunpack.c.h.b16 %v43
    %v594 = vunpack.c.l.b16 %v44
    %v595 = vunpack.c.h.b16 %v44
    %v596 = vunpack.c.l.b16 %v45
    %v597 = vunpack.c.h.b16 %v45
    %v598 = vunpack.c.l.b16 %v46
    %v599 = vunpack.c.h.b16 %v46
    %v600 = vunpack.c.l.b16 %v47
    %v601 = vunpack.c.h.b16 %v47
    %v602 = vunpack.c.l.b16 %v48
    %v603 = vunpack.c.h.b16 %v48
    %v604 = vunpack.c.l.b16 %v49
    %v605 = vunpack.c.h.b16 %v49
    %v606 = vunpack.c.l.b16 %v50
    %v607 = vunpack.c.h.b16 %v50
    %v608 = vunpack.c.l.b16 %v51
    %v609 = vunpack.c.h.b16 %v51
    %v610 = vunpack.c.l.b16 %v52
    %v611 = vunpack.c.h.b16 %v52
    %v612 = vunpack.c.l.b16 %v53
    %v613 = vunpack.c.h.b16 %v53
    %v614 = vunpack.c.l.b16 %v54
    %v615 = vunpack.c.h.b16 %v54
    %v616 = vunpack.c.l.b16 %v55
    %v617 = vunpack.c.h.b16 %v55
    %v618 = vunpack.c.l.b16 %v56
    %v619 = vunpack.c.h.b16 %v56
    %v620 = vunpack.c.l.b16 %v57
    %v621 = vunpack.c.h.b16 %v57
    %v622 = vunpack.c.l.b16 %v58
    %v623 = vunpack.c.h.b16 %v58
    %v624 = vunpack.c.l.b16 %v59
    %v625 = vunpack.c.h.b16 %v59
    %v626 = vunpack.c.l.b16 %v60
    %v627 = vunpack.c.h.b16 %v60
    %v628 = vunpack.c.l.b16 %v61
    %v629 = vunpack.c.h.b16 %v61
    %v630 = vunpack.c.l.b16 %v62
    %v631 = vunpack.c.h.b16 %v62
    %v632 = vunpack.c.l.b16 %v63
    %v633 = vunpack.c.h.b16 %v63
    %v634 = vunpack.c.l.b16 %v64
    %v635 = vunpack.c.h.b16 %v64
    %v636 = vunpack.c.l.b16 %v65
    %v637 = vunpack.c.h.b16 %v65
    %v638 = vunpack.c.l.b16 %v66
    %v639 = vunpack.c.h.b16 %v66
    %v640 = vunpack.c.l.b16 %v67
    %v641 = vunpack.c.h.b16 %v67
    %v642 = vunpack.c.l.b16 %v68
    %v643 = vunpack.c.h.b16 %v68
    %v644 = vunpack.c.l.b16 %v69
    %v645 = vunpack.c.h.b16 %v69
    %v646 = vunpack.c.l.b16 %v70
    %v647 = vunpack.c.h.b16 %v70
    %v648 = vunpack.c.l.b16 %v71
    %v649 = vunpack.c.h.b16 %v71
    %v650 = vunpack.c.l.b16 %v72
    %v651 = vunpack.c.h.b16 %v72
    %v652 = vunpack.c.l.b16 %v73
    %v653 = vunpack.c.h.b16 %v73
    %v654 = vunpack.c.l.b16 %v74
    %v655 = vunpack.c.h.b16 %v74
    %v656 = vunpack.c.l.b16 %v75
    %v657 = vunpack.c.h.b16 %v75
    %v658 = vunpack.c.l.b16 %v76
    %v659 = vunpack.c.h.b16 %v76
    %v660 = vunpack.c.l.b16 %v77
    %v661 = vunpack.c.h.b16 %v77
    %v662 = vunpack.c.l.b16 %v78
    %v663 = vunpack.c.h.b16 %v78
    %v664 = vunpack.c.l.b16 %v79
    %v665 = vunpack.c.h.b16 %v79
    %v666 = vunpack.c.l.b16 %v80
    %v667 = vunpack.c.h.b16 %v80
    %v668 = vunpack.c.l.b16 %v81
    %v669 = vunpack.c.h.b16 %v81
    %v670 = vunpack.c.l.b16 %v82
    %v671 = vunpack.c.h.b16 %v82
    %v672 = vunpack.c.l.b16 %v83
    %v673 = vunpack.c.h.b16 %v83
    %v674 = vunpack.c.l.b16 %v84
    %v675 = vunpack.c.h.b16 %v84
    %v676 = vunpack.c.l.b16 %v85
    %v677 = vunpack.c.h.b16 %v85
    %v678 = vunpack.c.l.b16 %v86
    %v679 = vunpack.c.h.b16 %v86
    %v680 = vunpack.c.l.b16 %v87
    %v681 = vunpack.c.h.b16 %v87
    %v682 = vunpack.c.l.b16 %v88
    %v683 = vunpack.c.h.b16 %v88
    %v684 = vunpack.c.l.b16 %v89
    %v685 = vunpack.c.h.b16 %v89
    %v686 = vunpack.c.l.b16 %v90
    %v687 = vunpack.c.h.b16 %v90
    %v688 = vunpack.c.l.b16 %v91
    %v689 = vunpack.c.h.b16 %v91
    %v690 = vunpack.c.l.b16 %v92
    %v691 = vunpack.c.h.b16 %v92
    %v692 = vunpack.c.l.b16 %v93
    %v693 = vunpack.c.h.b16 %v93
    %v694 = vunpack.c.l.b16 %v94
    %v695 = vunpack.c.h.b16 %v94
    %v696 = vunpack.c.l.b16 %v95
    %v697 = vunpack.c.h.b16 %v95
    %v698 = vunpack.c.l.b16 %v96
    %v699 = vunpack.c.h.b16 %v96
    %v700 = vunpack.c.l.b16 %v97
    %v701 = vunpack.c.h.b16 %v97
    %v702 = vunpack.c.l.b16 %v98
    %v703 = vunpack.c.h.b16 %v98
    %v704 = vunpack.c.l.b16 %v99
    %v705 = vunpack.c.h.b16 %v99
    %v706 = vunpack.c.l.b16 %v100
    %v707 = vunpack.c.h.b16 %v100
    %v708 = vunpack.c.l.b16 %v101
    %v709 = vunpack.c.h.b16 %v101
    %v710 = vunpack.c.l.b16 %v102
    %v711 = vunpack.c.h.b16 %v102
    %v712 = vunpack.c.l.b16 %v103
    %v713 = vunpack.c.h.b16 %v103
    %v714 = vunpack.c.l.b16 %v104
    %v715 = vunpack.c.h.b16 %v104
    %v716 = vunpack.c.l.b16 %v105
    %v717 = vunpack.c.h.b16 %v105
    %v718 = vunpack.c.l.b16 %v106
    %v719 = vunpack.c.h.b16 %v106
    %v720 = vunpack.c.l.b16 %v107
    %v721 = vunpack.c.h.b16 %v107
    %v722 = vunpack.c.l.b16 %v108
    %v723 = vunpack.c.h.b16 %v108
    %v724 = vunpack.c.l.b16 %v109
    %v725 = vunpack.c.h.b16 %v109
    %v726 = vunpack.c.l.b16 %v110
    %v727 = vunpack.c.h.b16 %v110
    %v728 = vunpack.c.l.b16 %v111
    %v729 = vunpack.c.h.b16 %v111
    %v730 = vunpack.c.l.b16 %v112
    %v731 = vunpack.c.h.b16 %v112
    %v732 = vunpack.c.l.b16 %v113
    %v733 = vunpack.c.h.b16 %v113
    %v734 = vunpack.c.l.b16 %v114
    %v735 = vunpack.c.h.b16 %v114
    %v736 = vunpack.c.l.b16 %v115
    %v737 = vunpack.c.h.b16 %v115
    %v738 = vunpack.c.l.b16 %v116
    %v739 = vunpack.c.h.b16 %v116
    %v740 = vunpack.c.l.b16 %v117
    %v741 = vunpack.c.h.b16 %v117
    %v742 = vunpack.c.l.b16 %v118
    %v743 = vunpack.c.h.b16 %v118
    %v744 = vunpack.c.l.b16 %v119
    %v745 = vunpack.c.h.b16 %v119
    %v746 = vunpack.c.l.b16 %v120
    %v747 = vunpack.c.h.b16 %v120
    %v748 = vunpack.c.l.b16 %v121
    %v749 = vunpack.c.h.b16 %v121
    %v750 = vunpack.c.l.b16 %v122
    %v751 = vunpack.c.h.b16 %v122
    %v752 = vunpack.c.l.b16 %v123
    %v753 = vunpack.c.h.b16 %v123
    %v754 = vunpack.c.l.b16 %v124
    %v755 = vunpack.c.h.b16 %v124
    %v756 = vunpack.c.l.b16 %v125
    %v757 = vunpack.c.h.b16 %v125
    %v758 = vunpack.c.l.b16 %v126
    %v759 = vunpack.c.h.b16 %v126
    %v760 = vunpack.c.l.b16 %v127
    %v761 = vunpack.c.h.b16 %v127
    %v762 = vunpack.c.l.b16 %v128
    %v763 = vunpack.c.h.b16 %v128
    %v764 = vunpack.c.l.b16 %v129
    %v765 = vunpack.c.h.b16 %v129
    %v766 = vunpack.c.l.b16 %v130
    %v767 = vunpack.c.h.b16 %v130
    %v768 = vunpack.c.l.b16 %v131
    %v769 = vunpack.c.h.b16 %v131
    %v770 = vunpack.c.l.b16 %v132
    %v771 = vunpack.c.h.b16 %v132
    %v772 = vunpack.c.l.b16 %v133
    %v773 = vunpack.c.h.b16 %v133
    %v774 = vunpack.c.l.b16 %v134
    %v775 = vunpack.c.h.b16 %v134
    %v776 = vunpack.c.l.b16 %v135
    %v777 = vunpack.c.h.b16 %v135
    %v778 = vunpack.c.l.b16 %v136
    %v779 = vunpack.c.h.b16 %v136
    %v780 = vunpack.c.l.b16 %v137
    %v781 = vunpack.c.h.b16 %v137
    %v782 = vunpack.c.l.b16 %v138
    %v783 = vunpack.c.h.b16 %v138
    %v784 = vunpack.c.l.b16 %v139
    %v785 = vunpack.c.h.b16 %v139
    %v786 = vunpack.c.l.b16 %v140
    %v787 = vunpack.c.h.b16 %v140
    %v788 = vunpack.c.l.b16 %v141
    %v789 = vunpack.c.h.b16 %v141
    %v790 = vunpack.c.l.b16 %v142
    %v791 = vunpack.c.h.b16 %v142
    %v792 = vunpack.c.l.b16 %v143
    %v793 = vunpack.c.h.b16 %v143
    %v794 = vunpack.c.l.b16 %v144
    %v795 = vunpack.c.h.b16 %v144
    %v796 = vunpack.c.l.b16 %v145
    %v797 = vunpack.c.h.b16 %v145
    %v798 = vunpack.c.l.b16 %v146
    %v799 = vunpack.c.h.b16 %v146
    %v800 = vunpack.c.l.b16 %v147
    %v801 = vunpack.c.h.b16 %v147
    %v802 = vunpack.c.l.b16 %v148
    %v803 = vunpack.c.h.b16 %v148
    %v804 = vunpack.c.l.b16 %v149
    %v805 = vunpack.c.h.b16 %v149
    %v806 = vunpack.c.l.b16 %v150
    %v807 = vunpack.c.h.b16 %v150
    %v808 = vunpack.c.l.b16 %v151
    %v809 = vunpack.c.h.b16 %v151
    %v810 = vunpack.c.l.b16 %v152
    %v811 = vunpack.c.h.b16 %v152
    %v812 = vunpack.c.l.b16 %v153
    %v813 = vunpack.c.h.b16 %v153
    %v814 = vunpack.c.l.b16 %v154
    %v815 = vunpack.c.h.b16 %v154
    %v816 = vunpack.c.l.b16 %v155
    %v817 = vunpack.c.h.b16 %v155
    %v818 = vunpack.c.l.b16 %v156
    %v819 = vunpack.c.h.b16 %v156
    %v820 = vunpack.c.l.b16 %v157
    %v821 = vunpack.c.h.b16 %v157
    %v822 = vunpack.c.l.b16 %v158
    %v823 = vunpack.c.h.b16 %v158
    %v824 = vunpack.c.l.b16 %v159
    %v825 = vunpack.c.h.b16 %v159
    %v826 = vunpack.c.l.b16 %v160
    %v827 = vunpack.c.h.b16 %v160
    %v828 = vunpack.c.l.b16 %v161
    %v829 = vunpack.c.h.b16 %v161
    %v830 = vunpack.c.l.b16 %v162
    %v831 = vunpack.c.h.b16 %v162
    %v832 = vunpack.c.l.b16 %v163
    %v833 = vunpack.c.h.b16 %v163
    %v834 = vunpack.c.l.b16 %v164
    %v835 = vunpack.c.h.b16 %v164
    %v836 = vunpack.c.l.b16 %v165
    %v837 = vunpack.c.h.b16 %v165
    %v838 = vunpack.c.l.b16 %v166
    %v839 = vunpack.c.h.b16 %v166
    %v840 = vunpack.c.l.b16 %v167
    %v841 = vunpack.c.h.b16 %v167
    %v842 = vunpack.c.l.b16 %v168
    %v843 = vunpack.c.h.b16 %v168
    %v844 = vunpack.c.l.b16 %v169
    %v845 = vunpack.c.h.b16 %v169
    %v846 = vunpack.c.l.b16 %v170
    %v847 = vunpack.c.h.b16 %v170
    %v848 = vunpack.c.l.b16 %v171
    %v849 = vunpack.c.h.b16 %v171
    %v850 = vunpack.c.l.b16 %v172
    %v851 = vunpack.c.h.b16 %v172
    %v852 = vunpack.c.l.b16 %v173
    %v853 = vunpack.c.h.b16 %v173
    %v854 = vunpack.c.l.b16 %v174
    %v855 = vunpack.c.h.b16 %v174
    %v856 = vunpack.c.l.b16 %v175
    %v857 = vunpack.c.h.b16 %v175
    %v858 = vunpack.c.l.b16 %v176
    %v859 = vunpack.c.h.b16 %v176
    %v860 = vunpack.c.l.b16 %v177
    %v861 = vunpack.c.h.b16 %v177
    %v862 = vunpack.c.l.b16 %v178
    %v863 = vunpack.c.h.b16 %v178
    %v864 = vunpack.c.l.b16 %v179
    %v865 = vunpack.c.h.b16 %v179
    %v866 = vunpack.c.l.b16 %v180
    %v867 = vunpack.c.h.b16 %v180
    %v868 = vunpack.c.l.b16 %v181
    %v869 = vunpack.c.h.b16 %v181
    %v870 = vunpack.c.l.b16 %v182
    %v871 = vunpack.c.h.b16 %v182
    %v872 = vunpack.c.l.b16 %v183
    %v873 = vunpack.c.h.b16 %v183
    %v874 = vunpack.c.l.b16 %v184
    %v875 = vunpack.c.h.b16 %v184
    %v876 = vunpack.c.l.b16 %v185
    %v877 = vunpack.c.h.b16 %v185
    %v878 = vunpack.c.l.b16 %v186
    %v879 = vunpack.c.h.b16 %v186
    %v880 = vunpack.c.l.b16 %v187
    %v881 = vunpack.c.h.b16 %v187
    %v882 = vunpack.c.l.b16 %v188
    %v883 = vunpack.c.h.b16 %v188
    %v884 = vunpack.c.l.b16 %v189
    %v885 = vunpack.c.h.b16 %v189
    %v886 = vunpack.c.l.b16 %v190
    %v887 = vunpack.c.h.b16 %v190
    %v888 = vunpack.c.l.b16 %v191
    %v889 = vunpack.c.h.b16 %v191
    %v890 = vunpack.c.l.b16 %v192
    %v891 = vunpack.c.h.b16 %v192
    %v892 = vunpack.c.l.b16 %v193
    %v893 = vunpack.c.h.b16 %v193
    %v894 = vunpack.c.l.b16 %v194
    %v895 = vunpack.c.h.b16 %v194
    %v896 = vunpack.c.l.b16 %v195
    %v897 = vunpack.c.h.b16 %v195
    %v898 = vunpack.c.l.b16 %v196
    %v899 = vunpack.c.h.b16 %v196
    %v900 = vunpack.c.l.b16 %v197
    %v901 = vunpack.c.h.b16 %v197
    %v902 = vunpack.c.l.b16 %v198
    %v903 = vunpack.c.h.b16 %v198
    %v904 = vunpack.c.l.b16 %v199
    %v905 = vunpack.c.h.b16 %v199
    %v906 = vunpack.c.l.b16 %v200
    %v907 = vunpack.c.h.b16 %v200
    %v908 = vunpack.c.l.b16 %v201
    %v909 = vunpack.c.h.b16 %v201
    %v910 = vunpack.c.l.b16 %v202
    %v911 = vunpack.c.h.b16 %v202
    %v912 = vunpack.c.l.b16 %v203
    %v913 = vunpack.c.h.b16 %v203
    %v914 = vunpack.c.l.b16 %v204
    %v915 = vunpack.c.h.b16 %v204
    %v916 = vunpack.c.l.b16 %v205
    %v917 = vunpack.c.h.b16 %v205
    %v918 = vunpack.c.l.b16 %v206
    %v919 = vunpack.c.h.b16 %v206
    %v920 = vunpack.c.l.b16 %v207
    %v921 = vunpack.c.h.b16 %v207
    %v922 = vunpack.c.l.b16 %v208
    %v923 = vunpack.c.h.b16 %v208
    %v924 = vunpack.c.l.b16 %v209
    %v925 = vunpack.c.h.b16 %v209
    %v926 = vunpack.c.l.b16 %v210
    %v927 = vunpack.c.h.b16 %v210
    %v928 = vunpack.c.l.b16 %v211
    %v929 = vunpack.c.h.b16 %v211
    %v930 = vunpack.c.l.b16 %v212
    %v931 = vunpack.c.h.b16 %v212
    %v932 = vunpack.c.l.b16 %v213
    %v933 = vunpack.c.h.b16 %v213
    %v934 = vunpack.c.l.b16 %v214
    %v935 = vunpack.c.h.b16 %v214
    %v936 = vunpack.c.l.b16 %v215
    %v937 = vunpack.c.h.b16 %v215
    %v938 = vunpack.c.l.b16 %v216
    %v939 = vunpack.c.h.b16 %v216
    %v940 = vunpack.c.l.b16 %v217
    %v941 = vunpack.c.h.b16 %v217
    %v942 = vunpack.c.l.b16 %v218
    %v943 = vunpack.c.h.b16 %v218
    %v944 = vunpack.c.l.b16 %v219
    %v945 = vunpack.c.h.b16 %v219
    %v946 = vunpack.c.l.b16 %v220
    %v947 = vunpack.c.h.b16 %v220
    %v948 = vunpack.c.l.b16 %v221
    %v949 = vunpack.c.h.b16 %v221
    %v950 = vunpack.c.l.b16 %v222
    %v951 = vunpack.c.h.b16 %v222
    %v952 = vunpack.c.l.b16 %v223
    %v953 = vunpack.c.h.b16 %v223
    %v954 = vunpack.c.l.b16 %v224
    %v955 = vunpack.c.h.b16 %v224
    %v956 = vunpack.c.l.b16 %v225
    %v957 = vunpack.c.h.b16 %v225
    %v958 = vunpack.c.l.b16 %v226
    %v959 = vunpack.c.h.b16 %v226
    %v960 = vunpack.c.l.b16 %v227
    %v961 = vunpack.c.h.b16 %v227
    %v962 = vunpack.c.l.b16 %v228
    %v963 = vunpack.c.h.b16 %v228
    %v964 = vunpack.c.l.b16 %v229
    %v965 = vunpack.c.h.b16 %v229
    %v966 = vunpack.c.l.b16 %v230
    %v967 = vunpack.c.h.b16 %v230
    %v968 = vunpack.c.l.b16 %v231
    %v969 = vunpack.c.h.b16 %v231
    %v970 = vunpack.c.l.b16 %v232
    %v971 = vunpack.c.h.b16 %v232
    %v972 = vunpack.c.l.b16 %v233
    %v973 = vunpack.c.h.b16 %v233
    %v974 = vunpack.c.l.b16 %v234
    %v975 = vunpack.c.h.b16 %v234
    %v976 = vunpack.c.l.b16 %v235
    %v977 = vunpack.c.h.b16 %v235
    %v978 = vunpack.c.l.b16 %v236
    %v979 = vunpack.c.h.b16 %v236
    %v980 = vunpack.c.l.b16 %v237
    %v981 = vunpack.c.h.b16 %v237
    %v982 = vunpack.c.l.b16 %v238
    %v983 = vunpack.c.h.b16 %v238
    %v984 = vunpack.c.l.b16 %v239
    %v985 = vunpack.c.h.b16 %v239
    %v986 = vunpack.c.l.b16 %v240
    %v987 = vunpack.c.h.b16 %v240
    %v988 = vunpack.c.l.b16 %v241
    %v989 = vunpack.c.h.b16 %v241
    %v990 = vunpack.c.l.b16 %v242
    %v991 = vunpack.c.h.b16 %v242
    %v992 = vunpack.c.l.b16 %v243
    %v993 = vunpack.c.h.b16 %v243
    %v994 = vunpack.c.l.b16 %v244
    %v995 = vunpack.c.h.b16 %v244
    %v996 = vunpack.c.l.b16 %v245
    %v997 = vunpack.c.h.b16 %v245
    %v998 = vunpack.c.l.b16 %v246
    %v999 = vunpack.c.h.b16 %v246
    %v1000 = vunpack.c.l.b16 %v247
    %v1001 = vunpack.c.h.b16 %v247
    %v1002 = vunpack.c.l.b16 %v248
    %v1003 = vunpack.c.h.b16 %v248
    %v1004 = vunpack.c.l.b16 %v249
    %v1005 = vunpack.c.h.b16 %v249
    %v1006 = vunpack.c.l.b16 %v250
    %v1007 = vunpack.c.h.b16 %v250
    %v1008 = vunpack.c.l.b16 %v251
    %v1009 = vunpack.c.h.b16 %v251
    %v1010 = vunpack.c.l.b16 %v252
    %v1011 = vunpack.c.h.b16 %v252
    %v1012 = vunpack.c.l.b16 %v253
    %v1013 = vunpack.c.h.b16 %v253
    %v1014 = vunpack.c.l.b16 %v254
    %v1015 = vunpack.c.h.b16 %v254
    %v1016 = vunpack.c.l.b16 %v255
    %v1017 = vunpack.c.h.b16 %v255
    %v1018 = vunpack.c.l.b16 %v256
    %v1019 = vunpack.c.h.b16 %v256
    %v1020 = vunpack.c.l.b16 %v257
    %v1021 = vunpack.c.h.b16 %v257
    %v1022 = vunpack.c.l.b16 %v258
    %v1023 = vunpack.c.h.b16 %v258
    %v1024 = vunpack.c.l.b16 %v259
    %v1025 = vunpack.c.h.b16 %v259
    %v1026 = vunpack.c.l.b16 %v260
    %v1027 = vunpack.c.h.b16 %v260
    %v1028 = vunpack.c.l.b16 %v261
    %v1029 = vunpack.c.h.b16 %v261
    %v1030 = vunpack.c.l.b16 %v262
    %v1031 = vunpack.c.h.b16 %v262
    %v1032 = vunpack.c.l.b16 %v263
    %v1033 = vunpack.c.h.b16 %v263
    %v1034 = vunpack.c.l.b16 %v264
    %v1035 = vunpack.c.h.b16 %v264
    %v1036 = vunpack.c.l.b16 %v265
    %v1037 = vunpack.c.h.b16 %v265
    %v1038 = vunpack.c.l.b16 %v266
    %v1039 = vunpack.c.h.b16 %v266
    %v1040 = vunpack.c.l.b16 %v267
    %v1041 = vunpack.c.h.b16 %v267
    %v1042 = vunpack.c.l.b16 %v268
    %v1043 = vunpack.c.h.b16 %v268
    %v1044 = vunpack.c.l.b16 %v269
    %v1045 = vunpack.c.h.b16 %v269
    %v1046 = vunpack.c.l.b16 %v270
    %v1047 = vunpack.c.h.b16 %v270
    %v1048 = vunpack.c.l.b16 %v271
    %v1049 = vunpack.c.h.b16 %v271
    %v1050 = vunpack.c.l.b16 %v272
    %v1051 = vunpack.c.h.b16 %v272
    %v1052 = vunpack.c.l.b16 %v273
    %v1053 = vunpack.c.h.b16 %v273
    %v1054 = vunpack.c.l.b16 %v274
    %v1055 = vunpack.c.h.b16 %v274
    %v1056 = vunpack.c.l.b16 %v275
    %v1057 = vunpack.c.h.b16 %v275
    %v1058 = vunpack.c.l.b16 %v276
    %v1059 = vunpack.c.h.b16 %v276
    %v1060 = vunpack.c.l.b16 %v277
    %v1061 = vunpack.c.h.b16 %v277
    %v1062 = vunpack.c.l.b16 %v278
    %v1063 = vunpack.c.h.b16 %v278
    %v1064 = vunpack.c.l.b16 %v279
    %v1065 = vunpack.c.h.b16 %v279
    %v1066 = vunpack.c.l.b16 %v280
    %v1067 = vunpack.c.h.b16 %v280
    %v1068 = vunpack.c.l.b16 %v281
    %v1069 = vunpack.c.h.b16 %v281
    %v1070 = vunpack.c.l.b16 %v282
    %v1071 = vunpack.c.h.b16 %v282
    %v1072 = vunpack.c.l.b16 %v283
    %v1073 = vunpack.c.h.b16 %v283
    %v1074 = vunpack.c.l.b16 %v284
    %v1075 = vunpack.c.h.b16 %v284
    %v1076 = vunpack.c.l.b16 %v285
    %v1077 = vunpack.c.h.b16 %v285
    %v1078 = vunpack.c.l.b16 %v286
    %v1079 = vunpack.c.h.b16 %v286
    %v1080 = vunpack.c.l.b16 %v287
    %v1081 = vunpack.c.h.b16 %v287
    %v1082 = vunpack.c.l.b16 %v288
    %v1083 = vunpack.c.h.b16 %v288
    %v1084 = vunpack.c.l.b16 %v289
    %v1085 = vunpack.c.h.b16 %v289
    %v1086 = vpack.c.b16 %v578, %v574
    %v1087 = vpack.c.b16 %v579, %v575
    %v1088 = vpack.c.b16 %v580, %v576
    %v1089 = vpack.c.b16 %v581, %v577
    %v1090 = vpack.c.b16 %v586, %v582
    %v1091 = vpack.c.b16 %v587, %v583
    %v1092 = vpack.c.b16 %v588, %v584
    %v1093 = vpack.c.b16 %v589, %v585
    %v1094 = vpack.c.b16 %v594, %v590
    %v1095 = vpack.c.b16 %v595, %v591
    %v1096 = vpack.c.b16 %v596, %v592
    %v1097 = vpack.c.b16 %v597, %v593
    %v1098 = vpack.c.b16 %v602, %v598
    %v1099 = vpack.c.b16 %v603, %v599
    %v1100 = vpack.c.b16 %v604, %v600
    %v1101 = vpack.c.b16 %v605, %v601
    %v1102 = vpack.c.b16 %v610, %v606
    %v1103 = vpack.c.b16 %v611, %v607
    %v1104 = vpack.c.b16 %v612, %v608
    %v1105 = vpack.c.b16 %v613, %v609
    %v1106 = vpack.c.b16 %v618, %v614
    %v1107 = vpack.c.b16 %v619, %v615
    %v1108 = vpack.c.b16 %v620, %v616
    %v1109 = vpack.c.b16 %v621, %v617
    %v1110 = vpack.c.b16 %v626, %v622
    %v1111 = vpack.c.b16 %v627, %v623
    %v1112 = vpack.c.b16 %v628, %v624
    %v1113 = vpack.c.b16 %v629, %v625
    %v1114 = vpack.c.b16 %v634, %v630
    %v1115 = vpack.c.b16 %v635, %v631
    %v1116 = vpack.c.b16 %v636, %v632
    %v1117 = vpack.c.b16 %v637, %v633
    %v1118 = vpack.c.b16 %v642, %v638
    %v1119 = vpack.c.b16 %v643, %v639
    %v1120 = vpack.c.b16 %v644, %v640
    %v1121 = vpack.c.b16 %v645, %v641
    %v1122 = vpack.c.b16 %v650, %v646
    %v1123 = vpack.c.b16 %v651, %v647
    %v1124 = vpack.c.b16 %v652, %v648
    %v1125 = vpack.c.b16 %v653, %v649
    %v1126 = vpack.c.b16 %v658, %v654
    %v1127 = vpack.c.b16 %v659, %v655
    %v1128 = vpack.c.b16 %v660, %v656
    %v1129 = vpack.c.b16 %v661, %v657
    %v1130 = vpack.c.b16 %v666, %v662
    %v1131 = vpack.c.b16 %v667, %v663
    %v1132 = vpack.c.b16 %v668, %v664
    %v1133 = vpack.c.b16 %v669, %v665
    %v1134 = vpack.c.b16 %v674, %v670
    %v1135 = vpack.c.b16 %v675, %v671
    %v1136 = vpack.c.b16 %v676, %v672
    %v1137 = vpack.c.b16 %v677, %v673
    %v1138 = vpack.c.b16 %v682, %v678
    %v1139 = vpack.c.b16 %v683, %v679
    %v1140 = vpack.c.b16 %v684, %v680
    %v1141 = vpack.c.b16 %v685, %v681
    %v1142 = vpack.c.b16 %v690, %v686
    %v1143 = vpack.c.b16 %v691, %v687
    %v1144 = vpack.c.b16 %v692, %v688
    %v1145 = vpack.c.b16 %v693, %v689
    %v1146 = vpack.c.b16 %v698, %v694
    %v1147 = vpack.c.b16 %v699, %v695
    %v1148 = vpack.c.b16 %v700, %v696
    %v1149 = vpack.c.b16 %v701, %v697
    %v1150 = vpack.c.b16 %v706, %v702
    %v1151 = vpack.c.b16 %v707, %v703
    %v1152 = vpack.c.b16 %v708, %v704
    %v1153 = vpack.c.b16 %v709, %v705
    %v1154 = vpack.c.b16 %v714, %v710
    %v1155 = vpack.c.b16 %v715, %v711
    %v1156 = vpack.c.b16 %v716, %v712
    %v1157 = vpack.c.b16 %v717, %v713
    %v1158 = vpack.c.b16 %v722, %v718
    %v1159 = vpack.c.b16 %v723, %v719
    %v1160 = vpack.c.b16 %v724, %v720
    %v1161 = vpack.c.b16 %v725, %v721
    %v1162 = vpack.c.b16 %v730, %v726
    %v1163 = vpack.c.b16 %v731, %v727
    %v1164 = vpack.c.b16 %v732, %v728
    %v1165 = vpack.c.b16 %v733, %v729
    %v1166 = vpack.c.b16 %v738, %v734
    %v1167 = vpack.c.b16 %v739, %v735
    %v1168 = vpack.c.b16 %v740, %v736
    %v1169 = vpack.c.b16 %v741, %v737
    %v1170 = vpack.c.b16 %v746, %v742
    %v1171 = vpack.c.b16 %v747, %v743
    %v1172 = vpack.c.b16 %v748, %v744
    %v1173 = vpack.c.b16 %v749, %v745
    %v1174 = vpack.c.b16 %v754, %v750
    %v1175 = vpack.c.b16 %v755, %v751
    %v1176 = vpack.c.b16 %v756, %v752
    %v1177 = vpack.c.b16 %v757, %v753
    %v1178 = vpack.c.b16 %v762, %v758
    %v1179 = vpack.c.b16 %v763, %v759
    %v1180 = vpack.c.b16 %v764, %v760
    %v1181 = vpack.c.b16 %v765, %v761
    %v1182 = vpack.c.b16 %v770, %v766
    %v1183 = vpack.c.b16 %v771, %v767
    %v1184 = vpack.c.b16 %v772, %v768
    %v1185 = vpack.c.b16 %v773, %v769
    %v1186 = vpack.c.b16 %v778, %v774
    %v1187 = vpack.c.b16 %v779, %v775
    %v1188 = vpack.c.b16 %v780, %v776
    %v1189 = vpack.c.b16 %v781, %v777
    %v1190 = vpack.c.b16 %v786, %v782
    %v1191 = vpack.c.b16 %v787, %v783
    %v1192 = vpack.c.b16 %v788, %v784
    %v1193 = vpack.c.b16 %v789, %v785
    %v1194 = vpack.c.b16 %v794, %v790
    %v1195 = vpack.c.b16 %v795, %v791
    %v1196 = vpack.c.b16 %v796, %v792
    %v1197 = vpack.c.b16 %v797, %v793
    %v1198 = vpack.c.b16 %v802, %v798
    %v1199 = vpack.c.b16 %v803, %v799
    %v1200 = vpack.c.b16 %v804, %v800
    %v1201 = vpack.c.b16 %v805, %v801
    %v1202 = vpack.c.b16 %v810, %v806
    %v1203 = vpack.c.b16 %v811, %v807
    %v1204 = vpack.c.b16 %v812, %v808
    %v1205 = vpack.c.b16 %v813, %v809
    %v1206 = vpack.c.b16 %v818, %v814
    %v1207 = vpack.c.b16 %v819, %v815
    %v1208 = vpack.c.b16 %v820, %v816
    %v1209 = vpack.c.b16 %v821, %v817
    %v1210 = vpack.c.b16 %v826, %v822
    %v1211 = vpack.c.b16 %v827, %v823
    %v1212 = vpack.c.b16 %v828, %v824
    %v1213 = vpack.c.b16 %v829, %v825
    %v1214 = vpack.c.b16 %v834, %v830
    %v1215 = vpack.c.b16 %v835, %v831
    %v1216 = vpack.c.b16 %v836, %v832
    %v1217 = vpack.c.b16 %v837, %v833
    %v1218 = vpack.c.b16 %v842, %v838
    %v1219 = vpack.c.b16 %v843, %v839
    %v1220 = vpack.c.b16 %v844, %v840
    %v1221 = vpack.c.b16 %v845, %v841
    %v1222 = vpack.c.b16 %v850, %v846
    %v1223 = vpack.c.b16 %v851, %v847
    %v1224 = vpack.c.b16 %v852, %v848
    %v1225 = vpack.c.b16 %v853, %v849
    %v1226 = vpack.c.b16 %v858, %v854
    %v1227 = vpack.c.b16 %v859, %v855
    %v1228 = vpack.c.b16 %v860, %v856
    %v1229 = vpack.c.b16 %v861, %v857
    %v1230 = vpack.c.b16 %v866, %v862
    %v1231 = vpack.c.b16 %v867, %v863
    %v1232 = vpack.c.b16 %v868, %v864
    %v1233 = vpack.c.b16 %v869, %v865
    %v1234 = vpack.c.b16 %v874, %v870
    %v1235 = vpack.c.b16 %v875, %v871
    %v1236 = vpack.c.b16 %v876, %v872
    %v1237 = vpack.c.b16 %v877, %v873
    %v1238 = vpack.c.b16 %v882, %v878
    %v1239 = vpack.c.b16 %v883, %v879
    %v1240 = vpack.c.b16 %v884, %v880
    %v1241 = vpack.c.b16 %v885, %v881
    %v1242 = vpack.c.b16 %v890, %v886
    %v1243 = vpack.c.b16 %v891, %v887
    %v1244 = vpack.c.b16 %v892, %v888
    %v1245 = vpack.c.b16 %v893, %v889
    %v1246 = vpack.c.b16 %v898, %v894
    %v1247 = vpack.c.b16 %v899, %v895
    %v1248 = vpack.c.b16 %v900, %v896
    %v1249 = vpack.c.b16 %v901, %v897
    %v1250 = vpack.c.b16 %v906, %v902
    %v1251 = vpack.c.b16 %v907, %v903
    %v1252 = vpack.c.b16 %v908, %v904
    %v1253 = vpack.c.b16 %v909, %v905
    %v1254 = vpack.c.b16 %v914, %v910
    %v1255 = vpack.c.b16 %v915, %v911
    %v1256 = vpack.c.b16 %v916, %v912
    %v1257 = vpack.c.b16 %v917, %v913
    %v1258 = vpack.c.b16 %v922, %v918
    %v1259 = vpack.c.b16 %v923, %v919
    %v1260 = vpack.c.b16 %v924, %v920
    %v1261 = vpack.c.b16 %v925, %v921
    %v1262 = vpack.c.b16 %v930, %v926
    %v1263 = vpack.c.b16 %v931, %v927
    %v1264 = vpack.c.b16 %v932, %v928
    %v1265 = vpack.c.b16 %v933, %v929
    %v1266 = vpack.c.b16 %v938, %v934
    %v1267 = vpack.c.b16 %v939, %v935
    %v1268 = vpack.c.b16 %v940, %v936
    %v1269 = vpack.c.b16 %v941, %v937
    %v1270 = vpack.c.b16 %v946, %v942
    %v1271 = vpack.c.b16 %v947, %v943
    %v1272 = vpack.c.b16 %v948, %v944
    %v1273 = vpack.c.b16 %v949, %v945
    %v1274 = vpack.c.b16 %v954, %v950
    %v1275 = vpack.c.b16 %v955, %v951
    %v1276 = vpack.c.b16 %v956, %v952
    %v1277 = vpack.c.b16 %v957, %v953
    %v1278 = vpack.c.b16 %v962, %v958
    %v1279 = vpack.c.b16 %v963, %v959
    %v1280 = vpack.c.b16 %v964, %v960
    %v1281 = vpack.c.b16 %v965, %v961
    %v1282 = vpack.c.b16 %v970, %v966
    %v1283 = vpack.c.b16 %v971, %v967
    %v1284 = vpack.c.b16 %v972, %v968
    %v1285 = vpack.c.b16 %v973, %v969
    %v1286 = vpack.c.b16 %v978, %v974
    %v1287 = vpack.c.b16 %v979, %v975
    %v1288 = vpack.c.b16 %v980, %v976
    %v1289 = vpack.c.b16 %v981, %v977
    %v1290 = vpack.c.b16 %v986, %v982
    %v1291 = vpack.c.b16 %v987, %v983
    %v1292 = vpack.c.b16 %v988, %v984
    %v1293 = vpack.c.b16 %v989, %v985
    %v1294 = vpack.c.b16 %v994, %v990
    %v1295 = vpack.c.b16 %v995, %v991
    %v1296 = vpack.c.b16 %v996, %v992
    %v1297 = vpack.c.b16 %v997, %v993
    %v1298 = vpack.c.b16 %v1002, %v998
    %v1299 = vpack.c.b16 %v1003, %v999
    %v1300 = vpack.c.b16 %v1004, %v1000
    %v1301 = vpack.c.b16 %v1005, %v1001
    %v1302 = vpack.c.b16 %v1010, %v1006
    %v1303 = vpack.c.b16 %v1011, %v1007
    %v1304 = vpack.c.b16 %v1012, %v1008
    %v1305 = vpack.c.b16 %v1013, %v1009
    %v1306 = vpack.c.b16 %v1018, %v1014
    %v1307 = vpack.c.b16 %v1019, %v1015
    %v1308 = vpack.c.b16 %v1020, %v1016
    %v1309 = vpack.c.b16 %v1021, %v1017
    %v1310 = vpack.c.b16 %v1026, %v1022
    %v1311 = vpack.c.b16 %v1027, %v1023
    %v1312 = vpack.c.b16 %v1028, %v1024
    %v1313 = vpack.c.b16 %v1029, %v1025
    %v1314 = vpack.c.b16 %v1034, %v1030
    %v1315 = vpack.c.b16 %v1035, %v1031
    %v1316 = vpack.c.b16 %v1036, %v1032
    %v1317 = vpack.c.b16 %v1037, %v1033
    %v1318 = vpack.c.b16 %v1042, %v1038
    %v1319 = vpack.c.b16 %v1043, %v1039
    %v1320 = vpack.c.b16 %v1044, %v1040
    %v1321 = vpack.c.b16 %v1045, %v1041
    %v1322 = vpack.c.b16 %v1050, %v1046
    %v1323 = vpack.c.b16 %v1051, %v1047
    %v1324 = vpack.c.b16 %v1052, %v1048
    %v1325 = vpack.c.b16 %v1053, %v1049
    %v1326 = vpack.c.b16 %v1058, %v1054
    %v1327 = vpack.c.b16 %v1059, %v1055
    %v1328 = vpack.c.b16 %v1060, %v1056
    %v1329 = vpack.c.b16 %v1061, %v1057
    %v1330 = vpack.c.b16 %v1066, %v1062
    %v1331 = vpack.c.b16 %v1067, %v1063
    %v1332 = vpack.c.b16 %v1068, %v1064
    %v1333 = vpack.c.b16 %v1069, %v1065
    %v1334 = vpack.c.b16 %v1074, %v1070
    %v1335 = vpack.c.b16 %v1075, %v1071
    %v1336 = vpack.c.b16 %v1076, %v1072
    %v1337 = vpack.c.b16 %v1077, %v1073
    %v1338 = vpack.c.b16 %v1082, %v1078
    %v1339 = vpack.c.b16 %v1083, %v1079
    %v1340 = vpack.c.b16 %v1084, %v1080
    %v1341 = vpack.c.b16 %v1085, %v1081
    %1598 = vmatpush.bf16.msra.mxu0 %v1114
    %1599 = vmatpush.bf16.msra.mxu0 %v1110
    %1600 = vmatpush.bf16.msra.mxu0 %v1106
    %1601 = vmatpush.bf16.msra.mxu0 %v1102
    %1602 = vmatpush.bf16.msra.mxu0 %v1098
    %1603 = vmatpush.bf16.msra.mxu0 %v1094
    %1604 = vmatpush.bf16.msra.mxu0 %v1090
    %1605 = vmatpush.bf16.msra.mxu0 %v1086
    %1606 = vmatmul.bf16.gmra.mxu0 %v302
    %v1607 = vpop.f32.mrf.mxu0
    %v1608 = vadd.f32 %v292, %v1607
    %v1609 = vpop.f32.mrf.mxu0
    %1610 = vdwg.mxu0
    %1611 = vmatpush.bf16.msra.mxu0 %v1146
    %1612 = vmatpush.bf16.msra.mxu0 %v1142
    %1613 = vmatpush.bf16.msra.mxu0 %v1138
    %1614 = vmatpush.bf16.msra.mxu0 %v1134
    %1615 = vmatpush.bf16.msra.mxu0 %v1130
    %1616 = vmatpush.bf16.msra.mxu0 %v1126
    %1617 = vmatpush.bf16.msra.mxu0 %v1122
    %1618 = vmatpush.bf16.msra.mxu0 %v1118
    %1619 = vmatmul.bf16.gmra.mxu0 %v303
    %v1620 = vpop.f32.mrf.mxu0
    %v1621 = vadd.f32 %v1608, %v1620
    %v1622 = vpop.f32.mrf.mxu0
    %1623 = vdwg.mxu0
    %1624 = vmatpush.bf16.msra.mxu0 %v1178
    %1625 = vmatpush.bf16.msra.mxu0 %v1174
    %1626 = vmatpush.bf16.msra.mxu0 %v1170
    %1627 = vmatpush.bf16.msra.mxu0 %v1166
    %1628 = vmatpush.bf16.msra.mxu0 %v1162
    %1629 = vmatpush.bf16.msra.mxu0 %v1158
    %1630 = vmatpush.bf16.msra.mxu0 %v1154
    %1631 = vmatpush.bf16.msra.mxu0 %v1150
    %1632 = vmatmul.bf16.gmra.mxu0 %v304
    %v1633 = vpop.f32.mrf.mxu0
    %v1634 = vadd.f32 %v1621, %v1633
    %v1635 = vpop.f32.mrf.mxu0
    %1636 = vdwg.mxu0
    %1637 = vmatpush.bf16.msra.mxu0 %v1210
    %1638 = vmatpush.bf16.msra.mxu0 %v1206
    %1639 = vmatpush.bf16.msra.mxu0 %v1202
    %1640 = vmatpush.bf16.msra.mxu0 %v1198
    %1641 = vmatpush.bf16.msra.mxu0 %v1194
    %1642 = vmatpush.bf16.msra.mxu0 %v1190
    %1643 = vmatpush.bf16.msra.mxu0 %v1186
    %1644 = vmatpush.bf16.msra.mxu0 %v1182
    %1645 = vmatmul.bf16.gmra.mxu0 %v305
    %v1646 = vpop.f32.mrf.mxu0
    %v1647 = vadd.f32 %v1634, %v1646
    %v1648 = vpop.f32.mrf.mxu0
    %1649 = vdwg.mxu0
    %1650 = vmatpush.bf16.msra.mxu0 %v1242
    %1651 = vmatpush.bf16.msra.mxu0 %v1238
    %1652 = vmatpush.bf16.msra.mxu0 %v1234
    %1653 = vmatpush.bf16.msra.mxu0 %v1230
    %1654 = vmatpush.bf16.msra.mxu0 %v1226
    %1655 = vmatpush.bf16.msra.mxu0 %v1222
    %1656 = vmatpush.bf16.msra.mxu0 %v1218
    %1657 = vmatpush.bf16.msra.mxu0 %v1214
    %1658 = vmatmul.bf16.gmra.mxu0 %v306
    %v1659 = vpop.f32.mrf.mxu0
    %v1660 = vadd.f32 %v1647, %v1659
    %v1661 = vpop.f32.mrf.mxu0
    %1662 = vdwg.mxu0
    %1663 = vmatpush.bf16.msra.mxu0 %v1274
    %1664 = vmatpush.bf16.msra.mxu0 %v1270
    %1665 = vmatpush.bf16.msra.mxu0 %v1266
    %1666 = vmatpush.bf16.msra.mxu0 %v1262
    %1667 = vmatpush.bf16.msra.mxu0 %v1258
    %1668 = vmatpush.bf16.msra.mxu0 %v1254
    %1669 = vmatpush.bf16.msra.mxu0 %v1250
    %1670 = vmatpush.bf16.msra.mxu0 %v1246
    %1671 = vmatmul.bf16.gmra.mxu0 %v307
    %v1672 = vpop.f32.mrf.mxu0
    %v1673 = vadd.f32 %v1660, %v1672
    %v1674 = vpop.f32.mrf.mxu0
    %1675 = vdwg.mxu0
    %1676 = vmatpush.bf16.msra.mxu0 %v1306
    %1677 = vmatpush.bf16.msra.mxu0 %v1302
    %1678 = vmatpush.bf16.msra.mxu0 %v1298
    %1679 = vmatpush.bf16.msra.mxu0 %v1294
    %1680 = vmatpush.bf16.msra.mxu0 %v1290
    %1681 = vmatpush.bf16.msra.mxu0 %v1286
    %1682 = vmatpush.bf16.msra.mxu0 %v1282
    %1683 = vmatpush.bf16.msra.mxu0 %v1278
    %1684 = vmatmul.bf16.gmra.mxu0 %v308
    %v1685 = vpop.f32.mrf.mxu0
    %v1686 = vadd.f32 %v1673, %v1685
    %v1687 = vpop.f32.mrf.mxu0
    %1688 = vdwg.mxu0
    %1689 = vmatpush.bf16.msra.mxu0 %v1338
    %1690 = vmatpush.bf16.msra.mxu0 %v1334
    %1691 = vmatpush.bf16.msra.mxu0 %v1330
    %1692 = vmatpush.bf16.msra.mxu0 %v1326
    %1693 = vmatpush.bf16.msra.mxu0 %v1322
    %1694 = vmatpush.bf16.msra.mxu0 %v1318
    %1695 = vmatpush.bf16.msra.mxu0 %v1314
    %1696 = vmatpush.bf16.msra.mxu0 %v1310
    %1697 = vmatmul.bf16.gmra.mxu0 %v309
    %v1698 = vpop.f32.mrf.mxu0
    %v1699 = vadd.f32 %v1686, %v1698
    %v1700 = vpop.f32.mrf.mxu0
    %1701 = vdwg.mxu0
    %1702 = vmatpush.bf16.msra.mxu0 %v1115
    %1703 = vmatpush.bf16.msra.mxu0 %v1111
    %1704 = vmatpush.bf16.msra.mxu0 %v1107
    %1705 = vmatpush.bf16.msra.mxu0 %v1103
    %1706 = vmatpush.bf16.msra.mxu0 %v1099
    %1707 = vmatpush.bf16.msra.mxu0 %v1095
    %1708 = vmatpush.bf16.msra.mxu0 %v1091
    %1709 = vmatpush.bf16.msra.mxu0 %v1087
    %1710 = vmatmul.bf16.gmra.mxu0 %v302
    %v1711 = vpop.f32.mrf.mxu0
    %v1712 = vadd.f32 %v293, %v1711
    %v1713 = vpop.f32.mrf.mxu0
    %1714 = vdwg.mxu0
    %1715 = vmatpush.bf16.msra.mxu0 %v1147
    %1716 = vmatpush.bf16.msra.mxu0 %v1143
    %1717 = vmatpush.bf16.msra.mxu0 %v1139
    %1718 = vmatpush.bf16.msra.mxu0 %v1135
    %1719 = vmatpush.bf16.msra.mxu0 %v1131
    %1720 = vmatpush.bf16.msra.mxu0 %v1127
    %1721 = vmatpush.bf16.msra.mxu0 %v1123
    %1722 = vmatpush.bf16.msra.mxu0 %v1119
    %1723 = vmatmul.bf16.gmra.mxu0 %v303
    %v1724 = vpop.f32.mrf.mxu0
    %v1725 = vadd.f32 %v1712, %v1724
    %v1726 = vpop.f32.mrf.mxu0
    %1727 = vdwg.mxu0
    %1728 = vmatpush.bf16.msra.mxu0 %v1179
    %1729 = vmatpush.bf16.msra.mxu0 %v1175
    %1730 = vmatpush.bf16.msra.mxu0 %v1171
    %1731 = vmatpush.bf16.msra.mxu0 %v1167
    %1732 = vmatpush.bf16.msra.mxu0 %v1163
    %1733 = vmatpush.bf16.msra.mxu0 %v1159
    %1734 = vmatpush.bf16.msra.mxu0 %v1155
    %1735 = vmatpush.bf16.msra.mxu0 %v1151
    %1736 = vmatmul.bf16.gmra.mxu0 %v304
    %v1737 = vpop.f32.mrf.mxu0
    %v1738 = vadd.f32 %v1725, %v1737
    %v1739 = vpop.f32.mrf.mxu0
    %1740 = vdwg.mxu0
    %1741 = vmatpush.bf16.msra.mxu0 %v1211
    %1742 = vmatpush.bf16.msra.mxu0 %v1207
    %1743 = vmatpush.bf16.msra.mxu0 %v1203
    %1744 = vmatpush.bf16.msra.mxu0 %v1199
    %1745 = vmatpush.bf16.msra.mxu0 %v1195
    %1746 = vmatpush.bf16.msra.mxu0 %v1191
    %1747 = vmatpush.bf16.msra.mxu0 %v1187
    %1748 = vmatpush.bf16.msra.mxu0 %v1183
    %1749 = vmatmul.bf16.gmra.mxu0 %v305
    %v1750 = vpop.f32.mrf.mxu0
    %v1751 = vadd.f32 %v1738, %v1750
    %v1752 = vpop.f32.mrf.mxu0
    %1753 = vdwg.mxu0
    %1754 = vmatpush.bf16.msra.mxu0 %v1243
    %1755 = vmatpush.bf16.msra.mxu0 %v1239
    %1756 = vmatpush.bf16.msra.mxu0 %v1235
    %1757 = vmatpush.bf16.msra.mxu0 %v1231
    %1758 = vmatpush.bf16.msra.mxu0 %v1227
    %1759 = vmatpush.bf16.msra.mxu0 %v1223
    %1760 = vmatpush.bf16.msra.mxu0 %v1219
    %1761 = vmatpush.bf16.msra.mxu0 %v1215
    %1762 = vmatmul.bf16.gmra.mxu0 %v306
    %v1763 = vpop.f32.mrf.mxu0
    %v1764 = vadd.f32 %v1751, %v1763
    %v1765 = vpop.f32.mrf.mxu0
    %1766 = vdwg.mxu0
    %1767 = vmatpush.bf16.msra.mxu0 %v1275
    %1768 = vmatpush.bf16.msra.mxu0 %v1271
    %1769 = vmatpush.bf16.msra.mxu0 %v1267
    %1770 = vmatpush.bf16.msra.mxu0 %v1263
    %1771 = vmatpush.bf16.msra.mxu0 %v1259
    %1772 = vmatpush.bf16.msra.mxu0 %v1255
    %1773 = vmatpush.bf16.msra.mxu0 %v1251
    %1774 = vmatpush.bf16.msra.mxu0 %v1247
    %1775 = vmatmul.bf16.gmra.mxu0 %v307
    %v1776 = vpop.f32.mrf.mxu0
    %v1777 = vadd.f32 %v1764, %v1776
    %v1778 = vpop.f32.mrf.mxu0
    %1779 = vdwg.mxu0
    %1780 = vmatpush.bf16.msra.mxu0 %v1307
    %1781 = vmatpush.bf16.msra.mxu0 %v1303
    %1782 = vmatpush.bf16.msra.mxu0 %v1299
    %1783 = vmatpush.bf16.msra.mxu0 %v1295
    %1784 = vmatpush.bf16.msra.mxu0 %v1291
    %1785 = vmatpush.bf16.msra.mxu0 %v1287
    %1786 = vmatpush.bf16.msra.mxu0 %v1283
    %1787 = vmatpush.bf16.msra.mxu0 %v1279
    %1788 = vmatmul.bf16.gmra.mxu0 %v308
    %v1789 = vpop.f32.mrf.mxu0
    %v1790 = vadd.f32 %v1777, %v1789
    %v1791 = vpop.f32.mrf.mxu0
    %1792 = vdwg.mxu0
    %1793 = vmatpush.bf16.msra.mxu0 %v1339
    %1794 = vmatpush.bf16.msra.mxu0 %v1335
    %1795 = vmatpush.bf16.msra.mxu0 %v1331
    %1796 = vmatpush.bf16.msra.mxu0 %v1327
    %1797 = vmatpush.bf16.msra.mxu0 %v1323
    %1798 = vmatpush.bf16.msra.mxu0 %v1319
    %1799 = vmatpush.bf16.msra.mxu0 %v1315
    %1800 = vmatpush.bf16.msra.mxu0 %v1311
    %1801 = vmatmul.bf16.gmra.mxu0 %v309
    %v1802 = vpop.f32.mrf.mxu0
    %v1803 = vadd.f32 %v1790, %v1802
    %v1804 = vpop.f32.mrf.mxu0
    %1805 = vdwg.mxu0
    %1806 = vmatpush.bf16.msra.mxu0 %v1116
    %1807 = vmatpush.bf16.msra.mxu0 %v1112
    %1808 = vmatpush.bf16.msra.mxu0 %v1108
    %1809 = vmatpush.bf16.msra.mxu0 %v1104
    %1810 = vmatpush.bf16.msra.mxu0 %v1100
    %1811 = vmatpush.bf16.msra.mxu0 %v1096
    %1812 = vmatpush.bf16.msra.mxu0 %v1092
    %1813 = vmatpush.bf16.msra.mxu0 %v1088
    %1814 = vmatmul.bf16.gmra.mxu0 %v302
    %v1815 = vpop.f32.mrf.mxu0
    %v1816 = vadd.f32 %v294, %v1815
    %v1817 = vpop.f32.mrf.mxu0
    %1818 = vdwg.mxu0
    %1819 = vmatpush.bf16.msra.mxu0 %v1148
    %1820 = vmatpush.bf16.msra.mxu0 %v1144
    %1821 = vmatpush.bf16.msra.mxu0 %v1140
    %1822 = vmatpush.bf16.msra.mxu0 %v1136
    %1823 = vmatpush.bf16.msra.mxu0 %v1132
    %1824 = vmatpush.bf16.msra.mxu0 %v1128
    %1825 = vmatpush.bf16.msra.mxu0 %v1124
    %1826 = vmatpush.bf16.msra.mxu0 %v1120
    %1827 = vmatmul.bf16.gmra.mxu0 %v303
    %v1828 = vpop.f32.mrf.mxu0
    %v1829 = vadd.f32 %v1816, %v1828
    %v1830 = vpop.f32.mrf.mxu0
    %1831 = vdwg.mxu0
    %1832 = vmatpush.bf16.msra.mxu0 %v1180
    %1833 = vmatpush.bf16.msra.mxu0 %v1176
    %1834 = vmatpush.bf16.msra.mxu0 %v1172
    %1835 = vmatpush.bf16.msra.mxu0 %v1168
    %1836 = vmatpush.bf16.msra.mxu0 %v1164
    %1837 = vmatpush.bf16.msra.mxu0 %v1160
    %1838 = vmatpush.bf16.msra.mxu0 %v1156
    %1839 = vmatpush.bf16.msra.mxu0 %v1152
    %1840 = vmatmul.bf16.gmra.mxu0 %v304
    %v1841 = vpop.f32.mrf.mxu0
    %v1842 = vadd.f32 %v1829, %v1841
    %v1843 = vpop.f32.mrf.mxu0
    %1844 = vdwg.mxu0
    %1845 = vmatpush.bf16.msra.mxu0 %v1212
    %1846 = vmatpush.bf16.msra.mxu0 %v1208
    %1847 = vmatpush.bf16.msra.mxu0 %v1204
    %1848 = vmatpush.bf16.msra.mxu0 %v1200
    %1849 = vmatpush.bf16.msra.mxu0 %v1196
    %1850 = vmatpush.bf16.msra.mxu0 %v1192
    %1851 = vmatpush.bf16.msra.mxu0 %v1188
    %1852 = vmatpush.bf16.msra.mxu0 %v1184
    %1853 = vmatmul.bf16.gmra.mxu0 %v305
    %v1854 = vpop.f32.mrf.mxu0
    %v1855 = vadd.f32 %v1842, %v1854
    %v1856 = vpop.f32.mrf.mxu0
    %1857 = vdwg.mxu0
    %1858 = vmatpush.bf16.msra.mxu0 %v1244
    %1859 = vmatpush.bf16.msra.mxu0 %v1240
    %1860 = vmatpush.bf16.msra.mxu0 %v1236
    %1861 = vmatpush.bf16.msra.mxu0 %v1232
    %1862 = vmatpush.bf16.msra.mxu0 %v1228
    %1863 = vmatpush.bf16.msra.mxu0 %v1224
    %1864 = vmatpush.bf16.msra.mxu0 %v1220
    %1865 = vmatpush.bf16.msra.mxu0 %v1216
    %1866 = vmatmul.bf16.gmra.mxu0 %v306
    %v1867 = vpop.f32.mrf.mxu0
    %v1868 = vadd.f32 %v1855, %v1867
    %v1869 = vpop.f32.mrf.mxu0
    %1870 = vdwg.mxu0
    %1871 = vmatpush.bf16.msra.mxu0 %v1276
    %1872 = vmatpush.bf16.msra.mxu0 %v1272
    %1873 = vmatpush.bf16.msra.mxu0 %v1268
    %1874 = vmatpush.bf16.msra.mxu0 %v1264
    %1875 = vmatpush.bf16.msra.mxu0 %v1260
    %1876 = vmatpush.bf16.msra.mxu0 %v1256
    %1877 = vmatpush.bf16.msra.mxu0 %v1252
    %1878 = vmatpush.bf16.msra.mxu0 %v1248
    %1879 = vmatmul.bf16.gmra.mxu0 %v307
    %v1880 = vpop.f32.mrf.mxu0
    %v1881 = vadd.f32 %v1868, %v1880
    %v1882 = vpop.f32.mrf.mxu0
    %1883 = vdwg.mxu0
    %1884 = vmatpush.bf16.msra.mxu0 %v1308
    %1885 = vmatpush.bf16.msra.mxu0 %v1304
    %1886 = vmatpush.bf16.msra.mxu0 %v1300
    %1887 = vmatpush.bf16.msra.mxu0 %v1296
    %1888 = vmatpush.bf16.msra.mxu0 %v1292
    %1889 = vmatpush.bf16.msra.mxu0 %v1288
    %1890 = vmatpush.bf16.msra.mxu0 %v1284
    %1891 = vmatpush.bf16.msra.mxu0 %v1280
    %1892 = vmatmul.bf16.gmra.mxu0 %v308
    %v1893 = vpop.f32.mrf.mxu0
    %v1894 = vadd.f32 %v1881, %v1893
    %v1895 = vpop.f32.mrf.mxu0
    %1896 = vdwg.mxu0
    %1897 = vmatpush.bf16.msra.mxu0 %v1340
    %1898 = vmatpush.bf16.msra.mxu0 %v1336
    %1899 = vmatpush.bf16.msra.mxu0 %v1332
    %1900 = vmatpush.bf16.msra.mxu0 %v1328
    %1901 = vmatpush.bf16.msra.mxu0 %v1324
    %1902 = vmatpush.bf16.msra.mxu0 %v1320
    %1903 = vmatpush.bf16.msra.mxu0 %v1316
    %1904 = vmatpush.bf16.msra.mxu0 %v1312
    %1905 = vmatmul.bf16.gmra.mxu0 %v309
    %v1906 = vpop.f32.mrf.mxu0
    %v1907 = vadd.f32 %v1894, %v1906
    %v1908 = vpop.f32.mrf.mxu0
    %1909 = vdwg.mxu0
    %1910 = vmatpush.bf16.msra.mxu0 %v1117
    %1911 = vmatpush.bf16.msra.mxu0 %v1113
    %1912 = vmatpush.bf16.msra.mxu0 %v1109
    %1913 = vmatpush.bf16.msra.mxu0 %v1105
    %1914 = vmatpush.bf16.msra.mxu0 %v1101
    %1915 = vmatpush.bf16.msra.mxu0 %v1097
    %1916 = vmatpush.bf16.msra.mxu0 %v1093
    %1917 = vmatpush.bf16.msra.mxu0 %v1089
    %1918 = vmatmul.bf16.gmra.mxu0 %v302
    %v1919 = vpop.f32.mrf.mxu0
    %v1920 = vadd.f32 %v295, %v1919
    %v1921 = vpop.f32.mrf.mxu0
    %1922 = vdwg.mxu0
    %1923 = vmatpush.bf16.msra.mxu0 %v1149
    %1924 = vmatpush.bf16.msra.mxu0 %v1145
    %1925 = vmatpush.bf16.msra.mxu0 %v1141
    %1926 = vmatpush.bf16.msra.mxu0 %v1137
    %1927 = vmatpush.bf16.msra.mxu0 %v1133
    %1928 = vmatpush.bf16.msra.mxu0 %v1129
    %1929 = vmatpush.bf16.msra.mxu0 %v1125
    %1930 = vmatpush.bf16.msra.mxu0 %v1121
    %1931 = vmatmul.bf16.gmra.mxu0 %v303
    %v1932 = vpop.f32.mrf.mxu0
    %v1933 = vadd.f32 %v1920, %v1932
    %v1934 = vpop.f32.mrf.mxu0
    %1935 = vdwg.mxu0
    %1936 = vmatpush.bf16.msra.mxu0 %v1181
    %1937 = vmatpush.bf16.msra.mxu0 %v1177
    %1938 = vmatpush.bf16.msra.mxu0 %v1173
    %1939 = vmatpush.bf16.msra.mxu0 %v1169
    %1940 = vmatpush.bf16.msra.mxu0 %v1165
    %1941 = vmatpush.bf16.msra.mxu0 %v1161
    %1942 = vmatpush.bf16.msra.mxu0 %v1157
    %1943 = vmatpush.bf16.msra.mxu0 %v1153
    %1944 = vmatmul.bf16.gmra.mxu0 %v304
    %v1945 = vpop.f32.mrf.mxu0
    %v1946 = vadd.f32 %v1933, %v1945
    %v1947 = vpop.f32.mrf.mxu0
    %1948 = vdwg.mxu0
    %1949 = vmatpush.bf16.msra.mxu0 %v1213
    %1950 = vmatpush.bf16.msra.mxu0 %v1209
    %1951 = vmatpush.bf16.msra.mxu0 %v1205
    %1952 = vmatpush.bf16.msra.mxu0 %v1201
    %1953 = vmatpush.bf16.msra.mxu0 %v1197
    %1954 = vmatpush.bf16.msra.mxu0 %v1193
    %1955 = vmatpush.bf16.msra.mxu0 %v1189
    %1956 = vmatpush.bf16.msra.mxu0 %v1185
    %1957 = vmatmul.bf16.gmra.mxu0 %v305
    %v1958 = vpop.f32.mrf.mxu0
    %v1959 = vadd.f32 %v1946, %v1958
    %v1960 = vpop.f32.mrf.mxu0
    %1961 = vdwg.mxu0
    %1962 = vmatpush.bf16.msra.mxu0 %v1245
    %1963 = vmatpush.bf16.msra.mxu0 %v1241
    %1964 = vmatpush.bf16.msra.mxu0 %v1237
    %1965 = vmatpush.bf16.msra.mxu0 %v1233
    %1966 = vmatpush.bf16.msra.mxu0 %v1229
    %1967 = vmatpush.bf16.msra.mxu0 %v1225
    %1968 = vmatpush.bf16.msra.mxu0 %v1221
    %1969 = vmatpush.bf16.msra.mxu0 %v1217
    %1970 = vmatmul.bf16.gmra.mxu0 %v306
    %v1971 = vpop.f32.mrf.mxu0
    %v1972 = vadd.f32 %v1959, %v1971
    %v1973 = vpop.f32.mrf.mxu0
    %1974 = vdwg.mxu0
    %1975 = vmatpush.bf16.msra.mxu0 %v1277
    %1976 = vmatpush.bf16.msra.mxu0 %v1273
    %1977 = vmatpush.bf16.msra.mxu0 %v1269
    %1978 = vmatpush.bf16.msra.mxu0 %v1265
    %1979 = vmatpush.bf16.msra.mxu0 %v1261
    %1980 = vmatpush.bf16.msra.mxu0 %v1257
    %1981 = vmatpush.bf16.msra.mxu0 %v1253
    %1982 = vmatpush.bf16.msra.mxu0 %v1249
    %1983 = vmatmul.bf16.gmra.mxu0 %v307
    %v1984 = vpop.f32.mrf.mxu0
    %v1985 = vadd.f32 %v1972, %v1984
    %v1986 = vpop.f32.mrf.mxu0
    %1987 = vdwg.mxu0
    %1988 = vmatpush.bf16.msra.mxu0 %v1309
    %1989 = vmatpush.bf16.msra.mxu0 %v1305
    %1990 = vmatpush.bf16.msra.mxu0 %v1301
    %1991 = vmatpush.bf16.msra.mxu0 %v1297
    %1992 = vmatpush.bf16.msra.mxu0 %v1293
    %1993 = vmatpush.bf16.msra.mxu0 %v1289
    %1994 = vmatpush.bf16.msra.mxu0 %v1285
    %1995 = vmatpush.bf16.msra.mxu0 %v1281
    %1996 = vmatmul.bf16.gmra.mxu0 %v308
    %v1997 = vpop.f32.mrf.mxu0
    %v1998 = vadd.f32 %v1985, %v1997
    %v1999 = vpop.f32.mrf.mxu0
    %2000 = vdwg.mxu0
    %2001 = vmatpush.bf16.msra.mxu0 %v1341
    %2002 = vmatpush.bf16.msra.mxu0 %v1337
    %2003 = vmatpush.bf16.msra.mxu0 %v1333
    %2004 = vmatpush.bf16.msra.mxu0 %v1329
    %2005 = vmatpush.bf16.msra.mxu0 %v1325
    %2006 = vmatpush.bf16.msra.mxu0 %v1321
    %2007 = vmatpush.bf16.msra.mxu0 %v1317
    %2008 = vmatpush.bf16.msra.mxu0 %v1313
    %2009 = vmatmul.bf16.gmra.mxu0 %v309
    %v2010 = vpop.f32.mrf.mxu0
    %v2011 = vadd.f32 %v1998, %v2010
    %v2012 = vpop.f32.mrf.mxu0
    %2013 = vdwg.mxu0
    %v2014 = vmax.f32 %v1699, 0.0
    %v2015 = vmax.f32 %v1803, 0.0
    %v2016 = vmax.f32 %v1907, 0.0
    %v2017 = vmax.f32 %v2011, 0.0
    %v2018 = vld [vmem:[%s3] sm:$0xf]
    %v2020 = vperm.slane %v2018, 0
    %v2021 = vperm.slane %v2018, 1
    %v2022 = vperm.slane %v2018, 2
    %v2023 = vperm.slane %v2018, 3
    %v2028 = vmul.f32 %v2014, %v2020
    %v2029 = vmul.f32 %v2015, %v2021
    %v2030 = vmul.f32 %v2016, %v2022
    %v2031 = vmul.f32 %v2017, %v2023
    %vm2032 = vcmask 1041408
    %v2033 = vsel %vm2032, %v2028, 0.0
    %v2034 = vsel %vm2032, %v2029, 0.0
    %v2035 = vadd.f32 %v2033, %v2034
    %v2036 = vsel %vm2032, %v2030, 0.0
    %v2037 = vadd.f32 %v2035, %v2036
    %v2038 = vsel %vm2032, %v2031, 0.0
    %v2039 = vadd.f32 %v2037, %v2038
    %2040 = vadd.xlane.f32.xlu0 %v2039
    %v2041 = vpop.xlane.xlu0 %2040
    %2042 = vst [vmem:[%s4] sm:$0x3] %v2041
    // Predicated region
    $region22: #{fcn_forward.1} parent=1 // pred_check
      _
    $region23: #{fcn_forward.1} parent=1 // pred_check_branch
      %2044 = sbr.rel (0) target = $region25
    $region24: #{fcn_forward.1} parent=1 // pred_region
      _
    $region25: #{fcn_forward.1} parent=1 // pred_fallthru
      _
    // Predicated region
    $region26: #{fcn_forward.1} parent=1 // pred_check
      _
    $region27: #{fcn_forward.1} parent=1 // pred_check_branch
      %2046 = sbr.rel (0) target = $region29
    $region28: #{fcn_forward.1} parent=1 // pred_region
      _
    $region29: #{fcn_forward.1} parent=1 // pred_fallthru
      _
    %2047 = vsyncpa [#allocation3], 1

</llo_original>
